<compile_context>
chip_gen: v7x
topology: tpu7x:2x2x1
jax: 0.10.0
libtpu: 0.0.40
codegen_flags: <defaults>
</compile_context>

<pallas_src>
import functools

import jax
import jax.numpy as jnp
from jax.experimental import pallas as pl
from jax.experimental.pallas import tpu as pltpu


def _round_up(x, m):
    return (x + m - 1) // m * m


def _cdiv(a, b):
    return -(-a // b)


def _label_agg_kernel(xm_ref, xh_ref, o_ref, *, n_win_hops, threshold):
    """One (row-tile, frame-tile) grid step.

    xm_ref: (rt, tf, H) f32  -- hop blocks [fi*tf, (fi+1)*tf) of the padded signal
    xh_ref: (rt, hh, H) f32  -- halo hop blocks [(fi+1)*tf, (fi+1)*tf + hh)
    o_ref:  (rt, tf)    f32  -- frames [fi*tf, (fi+1)*tf)
    """
    _, tf, _ = xm_ref.shape
    hh = xh_ref.shape[1]
    f32 = jnp.float32

    # Hop-block pre-reduction: sum H samples per hop block (minor-axis reduce).
    hs_main = jnp.sum(xm_ref[...], axis=-1)            # (rt, tf)
    hs_halo = jnp.sum(xh_ref[...], axis=-1)            # (rt, hh)

    # Frame f (tile-local) = sum of n_win_hops consecutive hop sums starting at
    # hop f.  Expressed as two tiny 0/1 matmuls; the selection matrices are
    # built in-registers and are ~H times smaller than the old sample-level
    # selection band.
    j1 = jax.lax.broadcasted_iota(jnp.int32, (tf, tf), 0)        # hop index
    f1 = jax.lax.broadcasted_iota(jnp.int32, (tf, tf), 1)        # frame index
    m1 = ((j1 >= f1) & (j1 < f1 + n_win_hops)).astype(f32)
    j2 = jax.lax.broadcasted_iota(jnp.int32, (hh, tf), 0) + tf   # halo hop index
    f2 = jax.lax.broadcasted_iota(jnp.int32, (hh, tf), 1)
    m2 = ((j2 >= f2) & (j2 < f2 + n_win_hops)).astype(f32)

    acc = jnp.dot(hs_main, m1, preferred_element_type=f32)
    acc = acc + jnp.dot(hs_halo, m2, preferred_element_type=f32)

    o_ref[...] = (acc > threshold).astype(f32)


def label_processor(x, ilens, *, win_length=512, hop_length=128, center=True):
    """JAX/Pallas equivalent of LabelProcessor.forward.

    Args:
      x:     (B, T, D) float 0/1 labels
      ilens: (B,) int32 valid lengths
    Returns:
      output: (B, F, D) float32
      olens:  (B,) int32
    """
    B, T, D = x.shape
    W, H = win_length, hop_length
    if W % H != 0:
        # TODO(synk): general W % H != 0 needs a sample-level banded path.
        raise NotImplementedError("kernel requires win_length % hop_length == 0")
    pad = W // 2 if center else 0
    F = (T + 2 * pad - W) // H + 1
    assert F >= 1, "input shorter than one analysis window"
    R = W // H                       # hop blocks per analysis window
    threshold = float(W // 2)

    # ---- tile-size selection ------------------------------------------------
    if F >= 512:
        tf = 512
    elif F >= 256:
        tf = 256
    else:
        tf = 128                     # output stays lane-dense (>=128 lanes)
    n_ftiles = _cdiv(F, tf)

    hh = max(8, _round_up(R - 1, 8))   # halo hop blocks (sublane-aligned)
    assert tf % hh == 0, "halo block must evenly divide the frame tile"
    n_hop_alloc = n_ftiles * tf + hh
    L = n_hop_alloc * H              # padded time samples presented to kernel

    rows = B * D
    main_block_bytes_per_row = tf * H * 4          # f32 main span per row
    vmem_budget = 24 * 1024 * 1024                 # double-buffered main input
    rt_cap = max(8, (vmem_budget // (2 * main_block_bytes_per_row)) // 8 * 8)
    rows8 = _round_up(rows, 8)
    if rows8 <= rt_cap:
        rt, rows_pad = rows8, rows8
    else:
        rt = rt_cap
        rows_pad = _round_up(rows, rt)
    n_rtiles = rows_pad // rt

    # ---- layout plumbing (wrapper-side) --------------------------------------
    # (B, T, D) -> (B*D, T); keep f32 (exact for 0/1, safe for soft labels).
    x_rt = jnp.swapaxes(x, 1, 2).reshape(rows, T).astype(jnp.float32)
    # Materialize the centered left zero-pad and zero-fill on the right up to
    # the block allocation; samples past L - pad are never inside any valid
    # frame's window, so truncating them is safe.
    keep = min(T, L - pad)
    xp = jnp.pad(x_rt[:, :keep], ((0, rows_pad - rows), (pad, L - pad - keep)))
    xp3 = xp.reshape(rows_pad, n_hop_alloc, H)   # hop blocks on sublanes, samples on lanes

    grid = (n_rtiles, n_ftiles)
    hops_per_halo_step = tf // hh
    kernel = functools.partial(_label_agg_kernel, n_win_hops=R, threshold=threshold)

    out = pl.pallas_call(
        kernel,
        out_shape=jax.ShapeDtypeStruct((rows_pad, n_ftiles * tf), jnp.float32),
        grid_spec=pltpu.PrefetchScalarGridSpec(
            num_scalar_prefetch=0,
            grid=grid,
            in_specs=[
                # main span: hop blocks [fi*tf, (fi+1)*tf)
                pl.BlockSpec((rt, tf, H), lambda ri, fi: (ri, fi, 0)),
                # halo span: hop blocks [(fi+1)*tf, (fi+1)*tf + hh)
                pl.BlockSpec((rt, hh, H),
                             lambda ri, fi: (ri, (fi + 1) * hops_per_halo_step, 0)),
            ],
            out_specs=pl.BlockSpec((rt, tf), lambda ri, fi: (ri, fi)),
        ),
        compiler_params=pltpu.CompilerParams(
            dimension_semantics=("parallel", "parallel"),
            vmem_limit_bytes=48 * 1024 * 1024,
        ),
    )(xp3, xp3)

    # (rows_pad, F_alloc) -> (B, F, D)
    out = out[:rows, :F].reshape(B, D, F).transpose(0, 2, 1)

    if center:
        olens = (ilens + 2 * pad - W) // H + 1
    else:
        olens = (ilens - W) // H + 1
    return out, olens.astype(jnp.int32)


def _reference(x, ilens, *, win_length=512, hop_length=128, center=True):
    # Pure-JAX reference mirroring the PyTorch LabelAggregate semantics.
    B, T, D = x.shape
    pad = win_length // 2 if center else 0
    xp = jnp.pad(x, ((0, 0), (pad, pad), (0, 0))) if center else x
    Tp = xp.shape[1]
    F = (Tp - win_length) // hop_length + 1
    frames = jnp.stack(
        [xp[:, f * hop_length:f * hop_length + win_length, :].sum(axis=1)
         for f in range(F)],
        axis=1,
    )  # (B, F, D)
    out = (frames > (win_length // 2)).astype(jnp.float32)
    if center:
        olens = (ilens + 2 * pad - win_length) // hop_length + 1
    else:
        olens = (ilens - win_length) // hop_length + 1
    return out, olens.astype(jnp.int32)


if __name__ == "__main__":
    key = jax.random.PRNGKey(0)
    # Module defaults: win_length=512, hop_length=128, center=True.
    B, T, D = 2, 6000, 8
    win_length, hop_length, center = 512, 128, True

    k1, _ = jax.random.split(key)
    x = jax.random.bernoulli(k1, p=0.5, shape=(B, T, D)).astype(jnp.float32)
    ilens = jnp.array([T, T - 700], dtype=jnp.int32)

    out, olens = label_processor(
        x, ilens, win_length=win_length, hop_length=hop_length, center=center
    )
    out = jax.block_until_ready(out)
    olens = jax.block_until_ready(olens)

    ref_out, ref_olens = _reference(
        x, ilens, win_length=win_length, hop_length=hop_length, center=center
    )
    assert out.shape == ref_out.shape and out.dtype == jnp.float32
    assert jnp.array_equal(out, ref_out), "output mismatch vs reference"
    assert jnp.array_equal(olens, ref_olens), "olens mismatch vs reference"

    print("KERNEL_OK")
</pallas_src>

<mosaic_0001>
module attributes {stable_mosaic.version = 11 : i64} {
  func.func @_label_agg_kernel(%arg0: i32, %arg1: i32, %arg2: memref<16x128x128xf32, #tpu.memory_space<vmem>>, %arg3: memref<16x8x128xf32, #tpu.memory_space<vmem>>, %arg4: memref<16x128xf32, #tpu.memory_space<vmem>>) attributes {dimension_semantics = [#tpu.dimension_semantics<parallel>, #tpu.dimension_semantics<parallel>], iteration_bounds = array<i64: 1, 1>, scalar_prefetch = 0 : i64, scratch_operands = 0 : i64, tpu.core_type = #tpu.core_type<tc>, window_params = [{transform_indices = @transform_0, window_bounds = array<i64: 16, 128, 128>}, {transform_indices = @transform_1, window_bounds = array<i64: 16, 8, 128>}, {transform_indices = @transform_2, window_bounds = array<i64: 16, 128>}]} {
    %c0 = arith.constant 0 : index
    %c0_0 = arith.constant 0 : index
    %c0_1 = arith.constant 0 : index
    %0 = vector.load %arg2[%c0, %c0_0, %c0_1] : memref<16x128x128xf32, #tpu.memory_space<vmem>>, vector<16x128x128xf32>
    %cst = arith.constant dense<0.000000e+00> : vector<16x128xf32>
    %1 = vector.multi_reduction <add>, %0, %cst [2] : vector<16x128x128xf32> to vector<16x128xf32>
    %c0_2 = arith.constant 0 : index
    %c0_3 = arith.constant 0 : index
    %c0_4 = arith.constant 0 : index
    %2 = vector.load %arg3[%c0_2, %c0_3, %c0_4] : memref<16x8x128xf32, #tpu.memory_space<vmem>>, vector<16x8x128xf32>
    %cst_5 = arith.constant dense<0.000000e+00> : vector<16x8xf32>
    %3 = vector.multi_reduction <add>, %2, %cst_5 [2] : vector<16x8x128xf32> to vector<16x8xf32>
    %4 = tpu.iota {dimensions = array<i32: 0>} : vector<128x128xi32>
    %5 = tpu.iota {dimensions = array<i32: 1>} : vector<128x128xi32>
    %6 = arith.cmpi sge, %4, %5 : vector<128x128xi32>
    %c4_i32 = arith.constant 4 : i32
    %7 = vector.broadcast %c4_i32 : i32 to vector<128x128xi32>
    %8 = arith.addi %5, %7 : vector<128x128xi32>
    %9 = arith.cmpi slt, %4, %8 : vector<128x128xi32>
    %10 = arith.andi %6, %9 : vector<128x128xi1>
    %11 = arith.extui %10 : vector<128x128xi1> to vector<128x128xi32>
    %12 = arith.sitofp %11 : vector<128x128xi32> to vector<128x128xf32>
    %13 = tpu.iota {dimensions = array<i32: 0>} : vector<8x128xi32>
    %c128_i32 = arith.constant 128 : i32
    %14 = vector.broadcast %c128_i32 : i32 to vector<8x128xi32>
    %15 = arith.addi %13, %14 : vector<8x128xi32>
    %16 = tpu.iota {dimensions = array<i32: 1>} : vector<8x128xi32>
    %17 = arith.cmpi sge, %15, %16 : vector<8x128xi32>
    %c4_i32_6 = arith.constant 4 : i32
    %18 = vector.broadcast %c4_i32_6 : i32 to vector<8x128xi32>
    %19 = arith.addi %16, %18 : vector<8x128xi32>
    %20 = arith.cmpi slt, %15, %19 : vector<8x128xi32>
    %21 = arith.andi %17, %20 : vector<8x128xi1>
    %22 = arith.extui %21 : vector<8x128xi1> to vector<8x128xi32>
    %23 = arith.sitofp %22 : vector<8x128xi32> to vector<8x128xf32>
    %cst_7 = arith.constant dense<0.000000e+00> : vector<16x128xf32>
    %24 = tpu.matmul %1, %12, %cst_7 {dimension_numbers = #tpu.dot_dimension_numbers<[1], [0], [0], [1], [0, 0, 1, 1], [], []>} : vector<16x128xf32>, vector<128x128xf32>, vector<16x128xf32> -> vector<16x128xf32>
    %cst_8 = arith.constant dense<0.000000e+00> : vector<16x128xf32>
    %25 = tpu.matmul %3, %23, %cst_8 {dimension_numbers = #tpu.dot_dimension_numbers<[1], [0], [0], [1], [0, 0, 1, 1], [], []>} : vector<16x8xf32>, vector<8x128xf32>, vector<16x128xf32> -> vector<16x128xf32>
    %26 = arith.addf %24, %25 : vector<16x128xf32>
    %cst_9 = arith.constant 2.560000e+02 : f32
    %27 = vector.broadcast %cst_9 : f32 to vector<16x128xf32>
    %28 = arith.cmpf ogt, %26, %27 : vector<16x128xf32>
    %29 = arith.extui %28 : vector<16x128xi1> to vector<16x128xi32>
    %30 = arith.sitofp %29 : vector<16x128xi32> to vector<16x128xf32>
    %c0_10 = arith.constant 0 : index
    %c0_11 = arith.constant 0 : index
    %31 = vector.load %arg4[%c0_10, %c0_11] : memref<16x128xf32, #tpu.memory_space<vmem>>, vector<16x128xf32>
    tpu.vector_store %arg4[%c0_10, %c0_11], %30 {strides = array<i32>} : memref<16x128xf32, #tpu.memory_space<vmem>>, vector<16x128xf32>,
    return
  }
  func.func @transform_0(%arg0: i32, %arg1: i32) -> (i32, i32, i32) {
    %c0_i32 = arith.constant 0 : i32
    %c0_i32_0 = arith.constant 0 : i32
    return %arg0, %arg1, %c0_i32 : i32, i32, i32
  }
  func.func @transform_1(%arg0: i32, %arg1: i32) -> (i32, i32, i32) {
    %c1_i32 = arith.constant 1 : i32
    %0 = arith.addi %arg1, %c1_i32 : i32
    %c16_i32 = arith.constant 16 : i32
    %1 = arith.muli %0, %c16_i32 : i32
    %c0_i32 = arith.constant 0 : i32
    %c0_i32_0 = arith.constant 0 : i32
    return %arg0, %1, %c0_i32 : i32, i32, i32
  }
  func.func @transform_2(%arg0: i32, %arg1: i32) -> (i32, i32) {
    %c0_i32 = arith.constant 0 : i32
    return %arg0, %arg1 : i32, i32
  }
}

</mosaic_0001>

<llo_original>
// kernel: tpu_custom_call.1
$region0: #{tpu_custom_call.1}
  #allocation0 [shape = 'u32[]', space=smem, size = 0x4, offset = 0x4, fixed_abs, tag = 'smem constant byte address 0x4 - core index']
  #allocation1 [shape = 'u32[144,128]{1,0:T(1,128)}', space=vmem, size = 0x12000, scoped, tag = 'internal scratch']
  #allocation8 [shape = 's32[]', space=sflag, size = 0x4, offset = 0, fixed_abs, tag = 'sflag constant byte address 0x0 - dummy sync flag']
  %s0 = inlined_call_operand.hbm [shape: f32[16,136,128], index: 0, kind: input, shape index: {}]
  %s1 = inlined_call_operand.hbm [shape: f32[16,136,128], index: 1, kind: input, shape index: {}]
  %s2 = inlined_call_operand.hbm [shape: f32[16,128], index: 2, kind: output, shape index: {}]
  %s3 = sld [smem:[#allocation0]]
  $region26: #{tpu_custom_call.1} parent=0
    _
  %s5 = ssub.s32 1, %s3
  %s6 = scalar_select 0, %s5, %s3
  $region1: #{tpu_custom_call.1} parent=0
    #allocation2 [shape = 'u8[1048576]{0}', space=vmem, size = 0x100000, scoped, tag = 'input window, operand 0, single buffered']
    #allocation3 [shape = 's32[1]{0}', space=sflag, size = 0x4, scoped, tag = 'scoped memory for tpu_custom_call.1']
    #allocation4 [shape = 's32[1]{0}', space=sflag, size = 0x4, scoped, tag = 'scoped memory for tpu_custom_call.1']
    #allocation5 [shape = 'u8[65536]{0}', space=vmem, size = 0x10000, scoped, tag = 'input window, operand 1, single buffered']
    #allocation6 [shape = 's32[1]{0}', space=sflag, size = 0x4, scoped, tag = 'scoped memory for tpu_custom_call.1']
    #allocation7 [shape = 'u8[8192]{0}', space=vmem, size = 0x2000, scoped, tag = 'output window, operand 0, single buffered']
    %7 = vsyncpa [#allocation3], 0
    %8 = vsyncpa [#allocation6], 0
    %9 = vsyncpa [#allocation4], 0
    // Predicated region
    $region2: #{tpu_custom_call.1} parent=1 // pred_check
      _
    $region3: #{tpu_custom_call.1} parent=1 // pred_check_branch
      %11 = sbr.rel (0) target = $region5
    $region4: #{tpu_custom_call.1} parent=1 // pred_region
      #allocation9 [shape = 'u32[6]{0}', space=smem, size = 0x18, scoped, tag = 'DMA stride descriptor']
      %s13 = ssub.s32 32768, 32768
      %14 = vsyncadd [#allocation3], %s13
      %s16 = sshll.u32 1, 14
      %s17 = sxor.u32 4294967295, %s16
      %s19 = sld [smem:[#allocation0]]
      %s20 = sadd.s32 2, %s19
      %s22 = sshll.u32 7, 26
      %s23 = sxor.u32 4294967295, %s22
      %s24 = sand.u32 0, %s23
      %s25 = sshll.u32 %s20, 26
      %s26 = sor.u32 %s24, %s25
      %s27 = sshll.u32 [#allocation2], 4
      %s28 = int_to_ptr.vmem [resolvable:$true] %s27
      %34 = sst [smem:[#allocation9]] 2176
      %s35 = scalar_lea.smem [#allocation9], 1
      %36 = sst [smem:[%s35]] 2048
      %s37 = scalar_lea.smem [#allocation9], 2
      %38 = sst [smem:[%s37]] 16
      %s39 = scalar_lea.smem [#allocation9], 3
      %40 = sst [smem:[%s39]] 128
      %s41 = scalar_lea.smem [#allocation9], 4
      %42 = sst [smem:[%s41]] 128
      %s43 = scalar_lea.smem [#allocation9], 5
      %44 = sst [smem:[%s43]] 8
      %46 = dma.general %s0, 32768, %s28, [#allocation3], [#allocation8], [#allocation9], %s26, 0
    $region5: #{tpu_custom_call.1} parent=1 // pred_fallthru
      _
    // Predicated region
    $region6: #{tpu_custom_call.1} parent=1 // pred_check
      _
    $region7: #{tpu_custom_call.1} parent=1 // pred_check_branch
      %48 = sbr.rel (0) target = $region9
    $region8: #{tpu_custom_call.1} parent=1 // pred_region
      %s49 = sadd.s32 0, 1
      %s50 = smul.u32 %s49, 16
      %s52 = ssub.s32 2048, 2048
      %53 = vsyncadd [#allocation6], %s52
      %s54 = smul.addr %s50, 128
      %s55 = scalar_lea.hbm %s1, %s54
      %s56 = sshll.u32 [#allocation5], 4
      %s57 = int_to_ptr.vmem [resolvable:$true] %s56
      %62 = dma.hbm_to_vmem [thread:$0]  %s55, 2048, %s57, [#allocation6], 2176, 128, 8
    $region9: #{tpu_custom_call.1} parent=1 // pred_fallthru
      _
    // Predicated region
    $region10: #{tpu_custom_call.1} parent=1 // pred_check
      _
    $region11: #{tpu_custom_call.1} parent=1 // pred_check_branch
      %64 = sbr.rel (0) target = $region13
    $region12: #{tpu_custom_call.1} parent=1 // pred_region
      %65 = dma.done [#allocation3], 32768
    $region13: #{tpu_custom_call.1} parent=1 // pred_fallthru
      _
    // Predicated region
    $region14: #{tpu_custom_call.1} parent=1 // pred_check
      _
    $region15: #{tpu_custom_call.1} parent=1 // pred_check_branch
      %67 = sbr.rel (0) target = $region17
    $region16: #{tpu_custom_call.1} parent=1 // pred_region
      %68 = dma.done [#allocation6], 2048
    $region17: #{tpu_custom_call.1} parent=1 // pred_fallthru
      _
    %s69 = sadd.s32 0, 1
    %s70 = smul.u32 %s69, 16
    %v71 = vld [vmem:[#allocation2] sm:$0xff]
    %v72 = vld [vmem:[#allocation2 + $0x8] sm:$0xff]
    %v73 = vld [vmem:[#allocation2 + $0x10] sm:$0xff]
    %v74 = vld [vmem:[#allocation2 + $0x18] sm:$0xff]
    %v75 = vld [vmem:[#allocation2 + $0x20] sm:$0xff]
    %v76 = vld [vmem:[#allocation2 + $0x28] sm:$0xff]
    %v77 = vld [vmem:[#allocation2 + $0x30] sm:$0xff]
    %v78 = vld [vmem:[#allocation2 + $0x38] sm:$0xff]
    %v79 = vld [vmem:[#allocation2 + $0x40] sm:$0xff]
    %v80 = vld [vmem:[#allocation2 + $0x48] sm:$0xff]
    %v81 = vld [vmem:[#allocation2 + $0x50] sm:$0xff]
    %v82 = vld [vmem:[#allocation2 + $0x58] sm:$0xff]
    %v83 = vld [vmem:[#allocation2 + $0x60] sm:$0xff]
    %v84 = vld [vmem:[#allocation2 + $0x68] sm:$0xff]
    %v85 = vld [vmem:[#allocation2 + $0x70] sm:$0xff]
    %v86 = vld [vmem:[#allocation2 + $0x78] sm:$0xff]
    %v87 = vld [vmem:[#allocation2 + $0x80] sm:$0xff]
    %v88 = vld [vmem:[#allocation2 + $0x88] sm:$0xff]
    %v89 = vld [vmem:[#allocation2 + $0x90] sm:$0xff]
    %v90 = vld [vmem:[#allocation2 + $0x98] sm:$0xff]
    %v91 = vld [vmem:[#allocation2 + $0xa0] sm:$0xff]
    %v92 = vld [vmem:[#allocation2 + $0xa8] sm:$0xff]
    %v93 = vld [vmem:[#allocation2 + $0xb0] sm:$0xff]
    %v94 = vld [vmem:[#allocation2 + $0xb8] sm:$0xff]
    %v95 = vld [vmem:[#allocation2 + $0xc0] sm:$0xff]
    %v96 = vld [vmem:[#allocation2 + $0xc8] sm:$0xff]
    %v97 = vld [vmem:[#allocation2 + $0xd0] sm:$0xff]
    %v98 = vld [vmem:[#allocation2 + $0xd8] sm:$0xff]
    %v99 = vld [vmem:[#allocation2 + $0xe0] sm:$0xff]
    %v100 = vld [vmem:[#allocation2 + $0xe8] sm:$0xff]
    %v101 = vld [vmem:[#allocation2 + $0xf0] sm:$0xff]
    %v102 = vld [vmem:[#allocation2 + $0xf8] sm:$0xff]
    %v103 = vld [vmem:[#allocation2 + $0x100] sm:$0xff]
    %v104 = vld [vmem:[#allocation2 + $0x108] sm:$0xff]
    %v105 = vld [vmem:[#allocation2 + $0x110] sm:$0xff]
    %v106 = vld [vmem:[#allocation2 + $0x118] sm:$0xff]
    %v107 = vld [vmem:[#allocation2 + $0x120] sm:$0xff]
    %v108 = vld [vmem:[#allocation2 + $0x128] sm:$0xff]
    %v109 = vld [vmem:[#allocation2 + $0x130] sm:$0xff]
    %v110 = vld [vmem:[#allocation2 + $0x138] sm:$0xff]
    %v111 = vld [vmem:[#allocation2 + $0x140] sm:$0xff]
    %v112 = vld [vmem:[#allocation2 + $0x148] sm:$0xff]
    %v113 = vld [vmem:[#allocation2 + $0x150] sm:$0xff]
    %v114 = vld [vmem:[#allocation2 + $0x158] sm:$0xff]
    %v115 = vld [vmem:[#allocation2 + $0x160] sm:$0xff]
    %v116 = vld [vmem:[#allocation2 + $0x168] sm:$0xff]
    %v117 = vld [vmem:[#allocation2 + $0x170] sm:$0xff]
    %v118 = vld [vmem:[#allocation2 + $0x178] sm:$0xff]
    %v119 = vld [vmem:[#allocation2 + $0x180] sm:$0xff]
    %v120 = vld [vmem:[#allocation2 + $0x188] sm:$0xff]
    %v121 = vld [vmem:[#allocation2 + $0x190] sm:$0xff]
    %v122 = vld [vmem:[#allocation2 + $0x198] sm:$0xff]
    %v123 = vld [vmem:[#allocation2 + $0x1a0] sm:$0xff]
    %v124 = vld [vmem:[#allocation2 + $0x1a8] sm:$0xff]
    %v125 = vld [vmem:[#allocation2 + $0x1b0] sm:$0xff]
    %v126 = vld [vmem:[#allocation2 + $0x1b8] sm:$0xff]
    %v127 = vld [vmem:[#allocation2 + $0x1c0] sm:$0xff]
    %v128 = vld [vmem:[#allocation2 + $0x1c8] sm:$0xff]
    %v129 = vld [vmem:[#allocation2 + $0x1d0] sm:$0xff]
    %v130 = vld [vmem:[#allocation2 + $0x1d8] sm:$0xff]
    %v131 = vld [vmem:[#allocation2 + $0x1e0] sm:$0xff]
    %v132 = vld [vmem:[#allocation2 + $0x1e8] sm:$0xff]
    %v133 = vld [vmem:[#allocation2 + $0x1f0] sm:$0xff]
    %v134 = vld [vmem:[#allocation2 + $0x1f8] sm:$0xff]
    %v135 = vld [vmem:[#allocation2 + $0x200] sm:$0xff]
    %v136 = vld [vmem:[#allocation2 + $0x208] sm:$0xff]
    %v137 = vld [vmem:[#allocation2 + $0x210] sm:$0xff]
    %v138 = vld [vmem:[#allocation2 + $0x218] sm:$0xff]
    %v139 = vld [vmem:[#allocation2 + $0x220] sm:$0xff]
    %v140 = vld [vmem:[#allocation2 + $0x228] sm:$0xff]
    %v141 = vld [vmem:[#allocation2 + $0x230] sm:$0xff]
    %v142 = vld [vmem:[#allocation2 + $0x238] sm:$0xff]
    %v143 = vld [vmem:[#allocation2 + $0x240] sm:$0xff]
    %v144 = vld [vmem:[#allocation2 + $0x248] sm:$0xff]
    %v145 = vld [vmem:[#allocation2 + $0x250] sm:$0xff]
    %v146 = vld [vmem:[#allocation2 + $0x258] sm:$0xff]
    %v147 = vld [vmem:[#allocation2 + $0x260] sm:$0xff]
    %v148 = vld [vmem:[#allocation2 + $0x268] sm:$0xff]
    %v149 = vld [vmem:[#allocation2 + $0x270] sm:$0xff]
    %v150 = vld [vmem:[#allocation2 + $0x278] sm:$0xff]
    %v151 = vld [vmem:[#allocation2 + $0x280] sm:$0xff]
    %v152 = vld [vmem:[#allocation2 + $0x288] sm:$0xff]
    %v153 = vld [vmem:[#allocation2 + $0x290] sm:$0xff]
    %v154 = vld [vmem:[#allocation2 + $0x298] sm:$0xff]
    %v155 = vld [vmem:[#allocation2 + $0x2a0] sm:$0xff]
    %v156 = vld [vmem:[#allocation2 + $0x2a8] sm:$0xff]
    %v157 = vld [vmem:[#allocation2 + $0x2b0] sm:$0xff]
    %v158 = vld [vmem:[#allocation2 + $0x2b8] sm:$0xff]
    %v159 = vld [vmem:[#allocation2 + $0x2c0] sm:$0xff]
    %v160 = vld [vmem:[#allocation2 + $0x2c8] sm:$0xff]
    %v161 = vld [vmem:[#allocation2 + $0x2d0] sm:$0xff]
    %v162 = vld [vmem:[#allocation2 + $0x2d8] sm:$0xff]
    %v163 = vld [vmem:[#allocation2 + $0x2e0] sm:$0xff]
    %v164 = vld [vmem:[#allocation2 + $0x2e8] sm:$0xff]
    %v165 = vld [vmem:[#allocation2 + $0x2f0] sm:$0xff]
    %v166 = vld [vmem:[#allocation2 + $0x2f8] sm:$0xff]
    %v167 = vld [vmem:[#allocation2 + $0x300] sm:$0xff]
    %v168 = vld [vmem:[#allocation2 + $0x308] sm:$0xff]
    %v169 = vld [vmem:[#allocation2 + $0x310] sm:$0xff]
    %v170 = vld [vmem:[#allocation2 + $0x318] sm:$0xff]
    %v171 = vld [vmem:[#allocation2 + $0x320] sm:$0xff]
    %v172 = vld [vmem:[#allocation2 + $0x328] sm:$0xff]
    %v173 = vld [vmem:[#allocation2 + $0x330] sm:$0xff]
    %v174 = vld [vmem:[#allocation2 + $0x338] sm:$0xff]
    %v175 = vld [vmem:[#allocation2 + $0x340] sm:$0xff]
    %v176 = vld [vmem:[#allocation2 + $0x348] sm:$0xff]
    %v177 = vld [vmem:[#allocation2 + $0x350] sm:$0xff]
    %v178 = vld [vmem:[#allocation2 + $0x358] sm:$0xff]
    %v179 = vld [vmem:[#allocation2 + $0x360] sm:$0xff]
    %v180 = vld [vmem:[#allocation2 + $0x368] sm:$0xff]
    %v181 = vld [vmem:[#allocation2 + $0x370] sm:$0xff]
    %v182 = vld [vmem:[#allocation2 + $0x378] sm:$0xff]
    %v183 = vld [vmem:[#allocation2 + $0x380] sm:$0xff]
    %v184 = vld [vmem:[#allocation2 + $0x388] sm:$0xff]
    %v185 = vld [vmem:[#allocation2 + $0x390] sm:$0xff]
    %v186 = vld [vmem:[#allocation2 + $0x398] sm:$0xff]
    %v187 = vld [vmem:[#allocation2 + $0x3a0] sm:$0xff]
    %v188 = vld [vmem:[#allocation2 + $0x3a8] sm:$0xff]
    %v189 = vld [vmem:[#allocation2 + $0x3b0] sm:$0xff]
    %v190 = vld [vmem:[#allocation2 + $0x3b8] sm:$0xff]
    %v191 = vld [vmem:[#allocation2 + $0x3c0] sm:$0xff]
    %v192 = vld [vmem:[#allocation2 + $0x3c8] sm:$0xff]
    %v193 = vld [vmem:[#allocation2 + $0x3d0] sm:$0xff]
    %v194 = vld [vmem:[#allocation2 + $0x3d8] sm:$0xff]
    %v195 = vld [vmem:[#allocation2 + $0x3e0] sm:$0xff]
    %v196 = vld [vmem:[#allocation2 + $0x3e8] sm:$0xff]
    %v197 = vld [vmem:[#allocation2 + $0x3f0] sm:$0xff]
    %v198 = vld [vmem:[#allocation2 + $0x3f8] sm:$0xff]
    %v199 = vld [vmem:[#allocation2 + $0x400] sm:$0xff]
    %v200 = vld [vmem:[#allocation2 + $0x408] sm:$0xff]
    %v201 = vld [vmem:[#allocation2 + $0x410] sm:$0xff]
    %v202 = vld [vmem:[#allocation2 + $0x418] sm:$0xff]
    %v203 = vld [vmem:[#allocation2 + $0x420] sm:$0xff]
    %v204 = vld [vmem:[#allocation2 + $0x428] sm:$0xff]
    %v205 = vld [vmem:[#allocation2 + $0x430] sm:$0xff]
    %v206 = vld [vmem:[#allocation2 + $0x438] sm:$0xff]
    %v207 = vld [vmem:[#allocation2 + $0x440] sm:$0xff]
    %v208 = vld [vmem:[#allocation2 + $0x448] sm:$0xff]
    %v209 = vld [vmem:[#allocation2 + $0x450] sm:$0xff]
    %v210 = vld [vmem:[#allocation2 + $0x458] sm:$0xff]
    %v211 = vld [vmem:[#allocation2 + $0x460] sm:$0xff]
    %v212 = vld [vmem:[#allocation2 + $0x468] sm:$0xff]
    %v213 = vld [vmem:[#allocation2 + $0x470] sm:$0xff]
    %v214 = vld [vmem:[#allocation2 + $0x478] sm:$0xff]
    %v215 = vld [vmem:[#allocation2 + $0x480] sm:$0xff]
    %v216 = vld [vmem:[#allocation2 + $0x488] sm:$0xff]
    %v217 = vld [vmem:[#allocation2 + $0x490] sm:$0xff]
    %v218 = vld [vmem:[#allocation2 + $0x498] sm:$0xff]
    %v219 = vld [vmem:[#allocation2 + $0x4a0] sm:$0xff]
    %v220 = vld [vmem:[#allocation2 + $0x4a8] sm:$0xff]
    %v221 = vld [vmem:[#allocation2 + $0x4b0] sm:$0xff]
    %v222 = vld [vmem:[#allocation2 + $0x4b8] sm:$0xff]
    %v223 = vld [vmem:[#allocation2 + $0x4c0] sm:$0xff]
    %v224 = vld [vmem:[#allocation2 + $0x4c8] sm:$0xff]
    %v225 = vld [vmem:[#allocation2 + $0x4d0] sm:$0xff]
    %v226 = vld [vmem:[#allocation2 + $0x4d8] sm:$0xff]
    %v227 = vld [vmem:[#allocation2 + $0x4e0] sm:$0xff]
    %v228 = vld [vmem:[#allocation2 + $0x4e8] sm:$0xff]
    %v229 = vld [vmem:[#allocation2 + $0x4f0] sm:$0xff]
    %v230 = vld [vmem:[#allocation2 + $0x4f8] sm:$0xff]
    %v231 = vld [vmem:[#allocation2 + $0x500] sm:$0xff]
    %v232 = vld [vmem:[#allocation2 + $0x508] sm:$0xff]
    %v233 = vld [vmem:[#allocation2 + $0x510] sm:$0xff]
    %v234 = vld [vmem:[#allocation2 + $0x518] sm:$0xff]
    %v235 = vld [vmem:[#allocation2 + $0x520] sm:$0xff]
    %v236 = vld [vmem:[#allocation2 + $0x528] sm:$0xff]
    %v237 = vld [vmem:[#allocation2 + $0x530] sm:$0xff]
    %v238 = vld [vmem:[#allocation2 + $0x538] sm:$0xff]
    %v239 = vld [vmem:[#allocation2 + $0x540] sm:$0xff]
    %v240 = vld [vmem:[#allocation2 + $0x548] sm:$0xff]
    %v241 = vld [vmem:[#allocation2 + $0x550] sm:$0xff]
    %v242 = vld [vmem:[#allocation2 + $0x558] sm:$0xff]
    %v243 = vld [vmem:[#allocation2 + $0x560] sm:$0xff]
    %v244 = vld [vmem:[#allocation2 + $0x568] sm:$0xff]
    %v245 = vld [vmem:[#allocation2 + $0x570] sm:$0xff]
    %v246 = vld [vmem:[#allocation2 + $0x578] sm:$0xff]
    %v247 = vld [vmem:[#allocation2 + $0x580] sm:$0xff]
    %v248 = vld [vmem:[#allocation2 + $0x588] sm:$0xff]
    %v249 = vld [vmem:[#allocation2 + $0x590] sm:$0xff]
    %v250 = vld [vmem:[#allocation2 + $0x598] sm:$0xff]
    %v251 = vld [vmem:[#allocation2 + $0x5a0] sm:$0xff]
    %v252 = vld [vmem:[#allocation2 + $0x5a8] sm:$0xff]
    %v253 = vld [vmem:[#allocation2 + $0x5b0] sm:$0xff]
    %v254 = vld [vmem:[#allocation2 + $0x5b8] sm:$0xff]
    %v255 = vld [vmem:[#allocation2 + $0x5c0] sm:$0xff]
    %v256 = vld [vmem:[#allocation2 + $0x5c8] sm:$0xff]
    %v257 = vld [vmem:[#allocation2 + $0x5d0] sm:$0xff]
    %v258 = vld [vmem:[#allocation2 + $0x5d8] sm:$0xff]
    %v259 = vld [vmem:[#allocation2 + $0x5e0] sm:$0xff]
    %v260 = vld [vmem:[#allocation2 + $0x5e8] sm:$0xff]
    %v261 = vld [vmem:[#allocation2 + $0x5f0] sm:$0xff]
    %v262 = vld [vmem:[#allocation2 + $0x5f8] sm:$0xff]
    %v263 = vld [vmem:[#allocation2 + $0x600] sm:$0xff]
    %v264 = vld [vmem:[#allocation2 + $0x608] sm:$0xff]
    %v265 = vld [vmem:[#allocation2 + $0x610] sm:$0xff]
    %v266 = vld [vmem:[#allocation2 + $0x618] sm:$0xff]
    %v267 = vld [vmem:[#allocation2 + $0x620] sm:$0xff]
    %v268 = vld [vmem:[#allocation2 + $0x628] sm:$0xff]
    %v269 = vld [vmem:[#allocation2 + $0x630] sm:$0xff]
    %v270 = vld [vmem:[#allocation2 + $0x638] sm:$0xff]
    %v271 = vld [vmem:[#allocation2 + $0x640] sm:$0xff]
    %v272 = vld [vmem:[#allocation2 + $0x648] sm:$0xff]
    %v273 = vld [vmem:[#allocation2 + $0x650] sm:$0xff]
    %v274 = vld [vmem:[#allocation2 + $0x658] sm:$0xff]
    %v275 = vld [vmem:[#allocation2 + $0x660] sm:$0xff]
    %v276 = vld [vmem:[#allocation2 + $0x668] sm:$0xff]
    %v277 = vld [vmem:[#allocation2 + $0x670] sm:$0xff]
    %v278 = vld [vmem:[#allocation2 + $0x678] sm:$0xff]
    %v279 = vld [vmem:[#allocation2 + $0x680] sm:$0xff]
    %v280 = vld [vmem:[#allocation2 + $0x688] sm:$0xff]
    %v281 = vld [vmem:[#allocation2 + $0x690] sm:$0xff]
    %v282 = vld [vmem:[#allocation2 + $0x698] sm:$0xff]
    %v283 = vld [vmem:[#allocation2 + $0x6a0] sm:$0xff]
    %v284 = vld [vmem:[#allocation2 + $0x6a8] sm:$0xff]
    %v285 = vld [vmem:[#allocation2 + $0x6b0] sm:$0xff]
    %v286 = vld [vmem:[#allocation2 + $0x6b8] sm:$0xff]
    %v287 = vld [vmem:[#allocation2 + $0x6c0] sm:$0xff]
    %v288 = vld [vmem:[#allocation2 + $0x6c8] sm:$0xff]
    %v289 = vld [vmem:[#allocation2 + $0x6d0] sm:$0xff]
    %v290 = vld [vmem:[#allocation2 + $0x6d8] sm:$0xff]
    %v291 = vld [vmem:[#allocation2 + $0x6e0] sm:$0xff]
    %v292 = vld [vmem:[#allocation2 + $0x6e8] sm:$0xff]
    %v293 = vld [vmem:[#allocation2 + $0x6f0] sm:$0xff]
    %v294 = vld [vmem:[#allocation2 + $0x6f8] sm:$0xff]
    %v295 = vld [vmem:[#allocation2 + $0x700] sm:$0xff]
    %v296 = vld [vmem:[#allocation2 + $0x708] sm:$0xff]
    %v297 = vld [vmem:[#allocation2 + $0x710] sm:$0xff]
    %v298 = vld [vmem:[#allocation2 + $0x718] sm:$0xff]
    %v299 = vld [vmem:[#allocation2 + $0x720] sm:$0xff]
    %v300 = vld [vmem:[#allocation2 + $0x728] sm:$0xff]
    %v301 = vld [vmem:[#allocation2 + $0x730] sm:$0xff]
    %v302 = vld [vmem:[#allocation2 + $0x738] sm:$0xff]
    %v303 = vld [vmem:[#allocation2 + $0x740] sm:$0xff]
    %v304 = vld [vmem:[#allocation2 + $0x748] sm:$0xff]
    %v305 = vld [vmem:[#allocation2 + $0x750] sm:$0xff]
    %v306 = vld [vmem:[#allocation2 + $0x758] sm:$0xff]
    %v307 = vld [vmem:[#allocation2 + $0x760] sm:$0xff]
    %v308 = vld [vmem:[#allocation2 + $0x768] sm:$0xff]
    %v309 = vld [vmem:[#allocation2 + $0x770] sm:$0xff]
    %v310 = vld [vmem:[#allocation2 + $0x778] sm:$0xff]
    %v311 = vld [vmem:[#allocation2 + $0x780] sm:$0xff]
    %v312 = vld [vmem:[#allocation2 + $0x788] sm:$0xff]
    %v313 = vld [vmem:[#allocation2 + $0x790] sm:$0xff]
    %v314 = vld [vmem:[#allocation2 + $0x798] sm:$0xff]
    %v315 = vld [vmem:[#allocation2 + $0x7a0] sm:$0xff]
    %v316 = vld [vmem:[#allocation2 + $0x7a8] sm:$0xff]
    %v317 = vld [vmem:[#allocation2 + $0x7b0] sm:$0xff]
    %v318 = vld [vmem:[#allocation2 + $0x7b8] sm:$0xff]
    %v319 = vld [vmem:[#allocation2 + $0x7c0] sm:$0xff]
    %v320 = vld [vmem:[#allocation2 + $0x7c8] sm:$0xff]
    %v321 = vld [vmem:[#allocation2 + $0x7d0] sm:$0xff]
    %v322 = vld [vmem:[#allocation2 + $0x7d8] sm:$0xff]
    %v323 = vld [vmem:[#allocation2 + $0x7e0] sm:$0xff]
    %v324 = vld [vmem:[#allocation2 + $0x7e8] sm:$0xff]
    %v325 = vld [vmem:[#allocation2 + $0x7f0] sm:$0xff]
    %v326 = vld [vmem:[#allocation2 + $0x7f8] sm:$0xff]
    %327 = vadd.xlane.f32.xlu0 %v71
    %v328 = vpop.xlane.xlu0 %327
    %329 = vadd.xlane.f32.xlu0 %v72
    %v330 = vpop.xlane.xlu0 %329
    %331 = vadd.xlane.f32.xlu0 %v73
    %v332 = vpop.xlane.xlu0 %331
    %333 = vadd.xlane.f32.xlu0 %v74
    %v334 = vpop.xlane.xlu0 %333
    %335 = vadd.xlane.f32.xlu0 %v75
    %v336 = vpop.xlane.xlu0 %335
    %337 = vadd.xlane.f32.xlu0 %v76
    %v338 = vpop.xlane.xlu0 %337
    %339 = vadd.xlane.f32.xlu0 %v77
    %v340 = vpop.xlane.xlu0 %339
    %341 = vadd.xlane.f32.xlu0 %v78
    %v342 = vpop.xlane.xlu0 %341
    %343 = vadd.xlane.f32.xlu0 %v79
    %v344 = vpop.xlane.xlu0 %343
    %345 = vadd.xlane.f32.xlu0 %v80
    %v346 = vpop.xlane.xlu0 %345
    %347 = vadd.xlane.f32.xlu0 %v81
    %v348 = vpop.xlane.xlu0 %347
    %349 = vadd.xlane.f32.xlu0 %v82
    %v350 = vpop.xlane.xlu0 %349
    %351 = vadd.xlane.f32.xlu0 %v83
    %v352 = vpop.xlane.xlu0 %351
    %353 = vadd.xlane.f32.xlu0 %v84
    %v354 = vpop.xlane.xlu0 %353
    %355 = vadd.xlane.f32.xlu0 %v85
    %v356 = vpop.xlane.xlu0 %355
    %357 = vadd.xlane.f32.xlu0 %v86
    %v358 = vpop.xlane.xlu0 %357
    %359 = vadd.xlane.f32.xlu0 %v87
    %v360 = vpop.xlane.xlu0 %359
    %361 = vadd.xlane.f32.xlu0 %v88
    %v362 = vpop.xlane.xlu0 %361
    %363 = vadd.xlane.f32.xlu0 %v89
    %v364 = vpop.xlane.xlu0 %363
    %365 = vadd.xlane.f32.xlu0 %v90
    %v366 = vpop.xlane.xlu0 %365
    %367 = vadd.xlane.f32.xlu0 %v91
    %v368 = vpop.xlane.xlu0 %367
    %369 = vadd.xlane.f32.xlu0 %v92
    %v370 = vpop.xlane.xlu0 %369
    %371 = vadd.xlane.f32.xlu0 %v93
    %v372 = vpop.xlane.xlu0 %371
    %373 = vadd.xlane.f32.xlu0 %v94
    %v374 = vpop.xlane.xlu0 %373
    %375 = vadd.xlane.f32.xlu0 %v95
    %v376 = vpop.xlane.xlu0 %375
    %377 = vadd.xlane.f32.xlu0 %v96
    %v378 = vpop.xlane.xlu0 %377
    %379 = vadd.xlane.f32.xlu0 %v97
    %v380 = vpop.xlane.xlu0 %379
    %381 = vadd.xlane.f32.xlu0 %v98
    %v382 = vpop.xlane.xlu0 %381
    %383 = vadd.xlane.f32.xlu0 %v99
    %v384 = vpop.xlane.xlu0 %383
    %385 = vadd.xlane.f32.xlu0 %v100
    %v386 = vpop.xlane.xlu0 %385
    %387 = vadd.xlane.f32.xlu0 %v101
    %v388 = vpop.xlane.xlu0 %387
    %389 = vadd.xlane.f32.xlu0 %v102
    %v390 = vpop.xlane.xlu0 %389
    %391 = vadd.xlane.f32.xlu0 %v103
    %v392 = vpop.xlane.xlu0 %391
    %393 = vadd.xlane.f32.xlu0 %v104
    %v394 = vpop.xlane.xlu0 %393
    %395 = vadd.xlane.f32.xlu0 %v105
    %v396 = vpop.xlane.xlu0 %395
    %397 = vadd.xlane.f32.xlu0 %v106
    %v398 = vpop.xlane.xlu0 %397
    %399 = vadd.xlane.f32.xlu0 %v107
    %v400 = vpop.xlane.xlu0 %399
    %401 = vadd.xlane.f32.xlu0 %v108
    %v402 = vpop.xlane.xlu0 %401
    %403 = vadd.xlane.f32.xlu0 %v109
    %v404 = vpop.xlane.xlu0 %403
    %405 = vadd.xlane.f32.xlu0 %v110
    %v406 = vpop.xlane.xlu0 %405
    %407 = vadd.xlane.f32.xlu0 %v111
    %v408 = vpop.xlane.xlu0 %407
    %409 = vadd.xlane.f32.xlu0 %v112
    %v410 = vpop.xlane.xlu0 %409
    %411 = vadd.xlane.f32.xlu0 %v113
    %v412 = vpop.xlane.xlu0 %411
    %413 = vadd.xlane.f32.xlu0 %v114
    %v414 = vpop.xlane.xlu0 %413
    %415 = vadd.xlane.f32.xlu0 %v115
    %v416 = vpop.xlane.xlu0 %415
    %417 = vadd.xlane.f32.xlu0 %v116
    %v418 = vpop.xlane.xlu0 %417
    %419 = vadd.xlane.f32.xlu0 %v117
    %v420 = vpop.xlane.xlu0 %419
    %421 = vadd.xlane.f32.xlu0 %v118
    %v422 = vpop.xlane.xlu0 %421
    %423 = vadd.xlane.f32.xlu0 %v119
    %v424 = vpop.xlane.xlu0 %423
    %425 = vadd.xlane.f32.xlu0 %v120
    %v426 = vpop.xlane.xlu0 %425
    %427 = vadd.xlane.f32.xlu0 %v121
    %v428 = vpop.xlane.xlu0 %427
    %429 = vadd.xlane.f32.xlu0 %v122
    %v430 = vpop.xlane.xlu0 %429
    %431 = vadd.xlane.f32.xlu0 %v123
    %v432 = vpop.xlane.xlu0 %431
    %433 = vadd.xlane.f32.xlu0 %v124
    %v434 = vpop.xlane.xlu0 %433
    %435 = vadd.xlane.f32.xlu0 %v125
    %v436 = vpop.xlane.xlu0 %435
    %437 = vadd.xlane.f32.xlu0 %v126
    %v438 = vpop.xlane.xlu0 %437
    %439 = vadd.xlane.f32.xlu0 %v127
    %v440 = vpop.xlane.xlu0 %439
    %441 = vadd.xlane.f32.xlu0 %v128
    %v442 = vpop.xlane.xlu0 %441
    %443 = vadd.xlane.f32.xlu0 %v129
    %v444 = vpop.xlane.xlu0 %443
    %445 = vadd.xlane.f32.xlu0 %v130
    %v446 = vpop.xlane.xlu0 %445
    %447 = vadd.xlane.f32.xlu0 %v131
    %v448 = vpop.xlane.xlu0 %447
    %449 = vadd.xlane.f32.xlu0 %v132
    %v450 = vpop.xlane.xlu0 %449
    %451 = vadd.xlane.f32.xlu0 %v133
    %v452 = vpop.xlane.xlu0 %451
    %453 = vadd.xlane.f32.xlu0 %v134
    %v454 = vpop.xlane.xlu0 %453
    %455 = vadd.xlane.f32.xlu0 %v135
    %v456 = vpop.xlane.xlu0 %455
    %457 = vadd.xlane.f32.xlu0 %v136
    %v458 = vpop.xlane.xlu0 %457
    %459 = vadd.xlane.f32.xlu0 %v137
    %v460 = vpop.xlane.xlu0 %459
    %461 = vadd.xlane.f32.xlu0 %v138
    %v462 = vpop.xlane.xlu0 %461
    %463 = vadd.xlane.f32.xlu0 %v139
    %v464 = vpop.xlane.xlu0 %463
    %465 = vadd.xlane.f32.xlu0 %v140
    %v466 = vpop.xlane.xlu0 %465
    %467 = vadd.xlane.f32.xlu0 %v141
    %v468 = vpop.xlane.xlu0 %467
    %469 = vadd.xlane.f32.xlu0 %v142
    %v470 = vpop.xlane.xlu0 %469
    %471 = vadd.xlane.f32.xlu0 %v143
    %v472 = vpop.xlane.xlu0 %471
    %473 = vadd.xlane.f32.xlu0 %v144
    %v474 = vpop.xlane.xlu0 %473
    %475 = vadd.xlane.f32.xlu0 %v145
    %v476 = vpop.xlane.xlu0 %475
    %477 = vadd.xlane.f32.xlu0 %v146
    %v478 = vpop.xlane.xlu0 %477
    %479 = vadd.xlane.f32.xlu0 %v147
    %v480 = vpop.xlane.xlu0 %479
    %481 = vadd.xlane.f32.xlu0 %v148
    %v482 = vpop.xlane.xlu0 %481
    %483 = vadd.xlane.f32.xlu0 %v149
    %v484 = vpop.xlane.xlu0 %483
    %485 = vadd.xlane.f32.xlu0 %v150
    %v486 = vpop.xlane.xlu0 %485
    %487 = vadd.xlane.f32.xlu0 %v151
    %v488 = vpop.xlane.xlu0 %487
    %489 = vadd.xlane.f32.xlu0 %v152
    %v490 = vpop.xlane.xlu0 %489
    %491 = vadd.xlane.f32.xlu0 %v153
    %v492 = vpop.xlane.xlu0 %491
    %493 = vadd.xlane.f32.xlu0 %v154
    %v494 = vpop.xlane.xlu0 %493
    %495 = vadd.xlane.f32.xlu0 %v155
    %v496 = vpop.xlane.xlu0 %495
    %497 = vadd.xlane.f32.xlu0 %v156
    %v498 = vpop.xlane.xlu0 %497
    %499 = vadd.xlane.f32.xlu0 %v157
    %v500 = vpop.xlane.xlu0 %499
    %501 = vadd.xlane.f32.xlu0 %v158
    %v502 = vpop.xlane.xlu0 %501
    %503 = vadd.xlane.f32.xlu0 %v159
    %v504 = vpop.xlane.xlu0 %503
    %505 = vadd.xlane.f32.xlu0 %v160
    %v506 = vpop.xlane.xlu0 %505
    %507 = vadd.xlane.f32.xlu0 %v161
    %v508 = vpop.xlane.xlu0 %507
    %509 = vadd.xlane.f32.xlu0 %v162
    %v510 = vpop.xlane.xlu0 %509
    %511 = vadd.xlane.f32.xlu0 %v163
    %v512 = vpop.xlane.xlu0 %511
    %513 = vadd.xlane.f32.xlu0 %v164
    %v514 = vpop.xlane.xlu0 %513
    %515 = vadd.xlane.f32.xlu0 %v165
    %v516 = vpop.xlane.xlu0 %515
    %517 = vadd.xlane.f32.xlu0 %v166
    %v518 = vpop.xlane.xlu0 %517
    %519 = vadd.xlane.f32.xlu0 %v167
    %v520 = vpop.xlane.xlu0 %519
    %521 = vadd.xlane.f32.xlu0 %v168
    %v522 = vpop.xlane.xlu0 %521
    %523 = vadd.xlane.f32.xlu0 %v169
    %v524 = vpop.xlane.xlu0 %523
    %525 = vadd.xlane.f32.xlu0 %v170
    %v526 = vpop.xlane.xlu0 %525
    %527 = vadd.xlane.f32.xlu0 %v171
    %v528 = vpop.xlane.xlu0 %527
    %529 = vadd.xlane.f32.xlu0 %v172
    %v530 = vpop.xlane.xlu0 %529
    %531 = vadd.xlane.f32.xlu0 %v173
    %v532 = vpop.xlane.xlu0 %531
    %533 = vadd.xlane.f32.xlu0 %v174
    %v534 = vpop.xlane.xlu0 %533
    %535 = vadd.xlane.f32.xlu0 %v175
    %v536 = vpop.xlane.xlu0 %535
    %537 = vadd.xlane.f32.xlu0 %v176
    %v538 = vpop.xlane.xlu0 %537
    %539 = vadd.xlane.f32.xlu0 %v177
    %v540 = vpop.xlane.xlu0 %539
    %541 = vadd.xlane.f32.xlu0 %v178
    %v542 = vpop.xlane.xlu0 %541
    %543 = vadd.xlane.f32.xlu0 %v179
    %v544 = vpop.xlane.xlu0 %543
    %545 = vadd.xlane.f32.xlu0 %v180
    %v546 = vpop.xlane.xlu0 %545
    %547 = vadd.xlane.f32.xlu0 %v181
    %v548 = vpop.xlane.xlu0 %547
    %549 = vadd.xlane.f32.xlu0 %v182
    %v550 = vpop.xlane.xlu0 %549
    %551 = vadd.xlane.f32.xlu0 %v183
    %v552 = vpop.xlane.xlu0 %551
    %553 = vadd.xlane.f32.xlu0 %v184
    %v554 = vpop.xlane.xlu0 %553
    %555 = vadd.xlane.f32.xlu0 %v185
    %v556 = vpop.xlane.xlu0 %555
    %557 = vadd.xlane.f32.xlu0 %v186
    %v558 = vpop.xlane.xlu0 %557
    %559 = vadd.xlane.f32.xlu0 %v187
    %v560 = vpop.xlane.xlu0 %559
    %561 = vadd.xlane.f32.xlu0 %v188
    %v562 = vpop.xlane.xlu0 %561
    %563 = vadd.xlane.f32.xlu0 %v189
    %v564 = vpop.xlane.xlu0 %563
    %565 = vadd.xlane.f32.xlu0 %v190
    %v566 = vpop.xlane.xlu0 %565
    %567 = vadd.xlane.f32.xlu0 %v191
    %v568 = vpop.xlane.xlu0 %567
    %569 = vadd.xlane.f32.xlu0 %v192
    %v570 = vpop.xlane.xlu0 %569
    %571 = vadd.xlane.f32.xlu0 %v193
    %v572 = vpop.xlane.xlu0 %571
    %573 = vadd.xlane.f32.xlu0 %v194
    %v574 = vpop.xlane.xlu0 %573
    %575 = vadd.xlane.f32.xlu0 %v195
    %v576 = vpop.xlane.xlu0 %575
    %577 = vadd.xlane.f32.xlu0 %v196
    %v578 = vpop.xlane.xlu0 %577
    %579 = vadd.xlane.f32.xlu0 %v197
    %v580 = vpop.xlane.xlu0 %579
    %581 = vadd.xlane.f32.xlu0 %v198
    %v582 = vpop.xlane.xlu0 %581
    %583 = vadd.xlane.f32.xlu0 %v199
    %v584 = vpop.xlane.xlu0 %583
    %585 = vadd.xlane.f32.xlu0 %v200
    %v586 = vpop.xlane.xlu0 %585
    %587 = vadd.xlane.f32.xlu0 %v201
    %v588 = vpop.xlane.xlu0 %587
    %589 = vadd.xlane.f32.xlu0 %v202
    %v590 = vpop.xlane.xlu0 %589
    %591 = vadd.xlane.f32.xlu0 %v203
    %v592 = vpop.xlane.xlu0 %591
    %593 = vadd.xlane.f32.xlu0 %v204
    %v594 = vpop.xlane.xlu0 %593
    %595 = vadd.xlane.f32.xlu0 %v205
    %v596 = vpop.xlane.xlu0 %595
    %597 = vadd.xlane.f32.xlu0 %v206
    %v598 = vpop.xlane.xlu0 %597
    %599 = vadd.xlane.f32.xlu0 %v207
    %v600 = vpop.xlane.xlu0 %599
    %601 = vadd.xlane.f32.xlu0 %v208
    %v602 = vpop.xlane.xlu0 %601
    %603 = vadd.xlane.f32.xlu0 %v209
    %v604 = vpop.xlane.xlu0 %603
    %605 = vadd.xlane.f32.xlu0 %v210
    %v606 = vpop.xlane.xlu0 %605
    %607 = vadd.xlane.f32.xlu0 %v211
    %v608 = vpop.xlane.xlu0 %607
    %609 = vadd.xlane.f32.xlu0 %v212
    %v610 = vpop.xlane.xlu0 %609
    %611 = vadd.xlane.f32.xlu0 %v213
    %v612 = vpop.xlane.xlu0 %611
    %613 = vadd.xlane.f32.xlu0 %v214
    %v614 = vpop.xlane.xlu0 %613
    %615 = vadd.xlane.f32.xlu0 %v215
    %v616 = vpop.xlane.xlu0 %615
    %617 = vadd.xlane.f32.xlu0 %v216
    %v618 = vpop.xlane.xlu0 %617
    %619 = vadd.xlane.f32.xlu0 %v217
    %v620 = vpop.xlane.xlu0 %619
    %621 = vadd.xlane.f32.xlu0 %v218
    %v622 = vpop.xlane.xlu0 %621
    %623 = vadd.xlane.f32.xlu0 %v219
    %v624 = vpop.xlane.xlu0 %623
    %625 = vadd.xlane.f32.xlu0 %v220
    %v626 = vpop.xlane.xlu0 %625
    %627 = vadd.xlane.f32.xlu0 %v221
    %v628 = vpop.xlane.xlu0 %627
    %629 = vadd.xlane.f32.xlu0 %v222
    %v630 = vpop.xlane.xlu0 %629
    %631 = vadd.xlane.f32.xlu0 %v223
    %v632 = vpop.xlane.xlu0 %631
    %633 = vadd.xlane.f32.xlu0 %v224
    %v634 = vpop.xlane.xlu0 %633
    %635 = vadd.xlane.f32.xlu0 %v225
    %v636 = vpop.xlane.xlu0 %635
    %637 = vadd.xlane.f32.xlu0 %v226
    %v638 = vpop.xlane.xlu0 %637
    %639 = vadd.xlane.f32.xlu0 %v227
    %v640 = vpop.xlane.xlu0 %639
    %641 = vadd.xlane.f32.xlu0 %v228
    %v642 = vpop.xlane.xlu0 %641
    %643 = vadd.xlane.f32.xlu0 %v229
    %v644 = vpop.xlane.xlu0 %643
    %645 = vadd.xlane.f32.xlu0 %v230
    %v646 = vpop.xlane.xlu0 %645
    %647 = vadd.xlane.f32.xlu0 %v231
    %v648 = vpop.xlane.xlu0 %647
    %649 = vadd.xlane.f32.xlu0 %v232
    %v650 = vpop.xlane.xlu0 %649
    %651 = vadd.xlane.f32.xlu0 %v233
    %v652 = vpop.xlane.xlu0 %651
    %653 = vadd.xlane.f32.xlu0 %v234
    %v654 = vpop.xlane.xlu0 %653
    %655 = vadd.xlane.f32.xlu0 %v235
    %v656 = vpop.xlane.xlu0 %655
    %657 = vadd.xlane.f32.xlu0 %v236
    %v658 = vpop.xlane.xlu0 %657
    %659 = vadd.xlane.f32.xlu0 %v237
    %v660 = vpop.xlane.xlu0 %659
    %661 = vadd.xlane.f32.xlu0 %v238
    %v662 = vpop.xlane.xlu0 %661
    %663 = vadd.xlane.f32.xlu0 %v239
    %v664 = vpop.xlane.xlu0 %663
    %665 = vadd.xlane.f32.xlu0 %v240
    %v666 = vpop.xlane.xlu0 %665
    %667 = vadd.xlane.f32.xlu0 %v241
    %v668 = vpop.xlane.xlu0 %667
    %669 = vadd.xlane.f32.xlu0 %v242
    %v670 = vpop.xlane.xlu0 %669
    %671 = vadd.xlane.f32.xlu0 %v243
    %v672 = vpop.xlane.xlu0 %671
    %673 = vadd.xlane.f32.xlu0 %v244
    %v674 = vpop.xlane.xlu0 %673
    %675 = vadd.xlane.f32.xlu0 %v245
    %v676 = vpop.xlane.xlu0 %675
    %677 = vadd.xlane.f32.xlu0 %v246
    %v678 = vpop.xlane.xlu0 %677
    %679 = vadd.xlane.f32.xlu0 %v247
    %v680 = vpop.xlane.xlu0 %679
    %681 = vadd.xlane.f32.xlu0 %v248
    %v682 = vpop.xlane.xlu0 %681
    %683 = vadd.xlane.f32.xlu0 %v249
    %v684 = vpop.xlane.xlu0 %683
    %685 = vadd.xlane.f32.xlu0 %v250
    %v686 = vpop.xlane.xlu0 %685
    %687 = vadd.xlane.f32.xlu0 %v251
    %v688 = vpop.xlane.xlu0 %687
    %689 = vadd.xlane.f32.xlu0 %v252
    %v690 = vpop.xlane.xlu0 %689
    %691 = vadd.xlane.f32.xlu0 %v253
    %v692 = vpop.xlane.xlu0 %691
    %693 = vadd.xlane.f32.xlu0 %v254
    %v694 = vpop.xlane.xlu0 %693
    %695 = vadd.xlane.f32.xlu0 %v255
    %v696 = vpop.xlane.xlu0 %695
    %697 = vadd.xlane.f32.xlu0 %v256
    %v698 = vpop.xlane.xlu0 %697
    %699 = vadd.xlane.f32.xlu0 %v257
    %v700 = vpop.xlane.xlu0 %699
    %701 = vadd.xlane.f32.xlu0 %v258
    %v702 = vpop.xlane.xlu0 %701
    %703 = vadd.xlane.f32.xlu0 %v259
    %v704 = vpop.xlane.xlu0 %703
    %705 = vadd.xlane.f32.xlu0 %v260
    %v706 = vpop.xlane.xlu0 %705
    %707 = vadd.xlane.f32.xlu0 %v261
    %v708 = vpop.xlane.xlu0 %707
    %709 = vadd.xlane.f32.xlu0 %v262
    %v710 = vpop.xlane.xlu0 %709
    %711 = vadd.xlane.f32.xlu0 %v263
    %v712 = vpop.xlane.xlu0 %711
    %713 = vadd.xlane.f32.xlu0 %v264
    %v714 = vpop.xlane.xlu0 %713
    %715 = vadd.xlane.f32.xlu0 %v265
    %v716 = vpop.xlane.xlu0 %715
    %717 = vadd.xlane.f32.xlu0 %v266
    %v718 = vpop.xlane.xlu0 %717
    %719 = vadd.xlane.f32.xlu0 %v267
    %v720 = vpop.xlane.xlu0 %719
    %721 = vadd.xlane.f32.xlu0 %v268
    %v722 = vpop.xlane.xlu0 %721
    %723 = vadd.xlane.f32.xlu0 %v269
    %v724 = vpop.xlane.xlu0 %723
    %725 = vadd.xlane.f32.xlu0 %v270
    %v726 = vpop.xlane.xlu0 %725
    %727 = vadd.xlane.f32.xlu0 %v271
    %v728 = vpop.xlane.xlu0 %727
    %729 = vadd.xlane.f32.xlu0 %v272
    %v730 = vpop.xlane.xlu0 %729
    %731 = vadd.xlane.f32.xlu0 %v273
    %v732 = vpop.xlane.xlu0 %731
    %733 = vadd.xlane.f32.xlu0 %v274
    %v734 = vpop.xlane.xlu0 %733
    %735 = vadd.xlane.f32.xlu0 %v275
    %v736 = vpop.xlane.xlu0 %735
    %737 = vadd.xlane.f32.xlu0 %v276
    %v738 = vpop.xlane.xlu0 %737
    %739 = vadd.xlane.f32.xlu0 %v277
    %v740 = vpop.xlane.xlu0 %739
    %741 = vadd.xlane.f32.xlu0 %v278
    %v742 = vpop.xlane.xlu0 %741
    %743 = vadd.xlane.f32.xlu0 %v279
    %v744 = vpop.xlane.xlu0 %743
    %745 = vadd.xlane.f32.xlu0 %v280
    %v746 = vpop.xlane.xlu0 %745
    %747 = vadd.xlane.f32.xlu0 %v281
    %v748 = vpop.xlane.xlu0 %747
    %749 = vadd.xlane.f32.xlu0 %v282
    %v750 = vpop.xlane.xlu0 %749
    %751 = vadd.xlane.f32.xlu0 %v283
    %v752 = vpop.xlane.xlu0 %751
    %753 = vadd.xlane.f32.xlu0 %v284
    %v754 = vpop.xlane.xlu0 %753
    %755 = vadd.xlane.f32.xlu0 %v285
    %v756 = vpop.xlane.xlu0 %755
    %757 = vadd.xlane.f32.xlu0 %v286
    %v758 = vpop.xlane.xlu0 %757
    %759 = vadd.xlane.f32.xlu0 %v287
    %v760 = vpop.xlane.xlu0 %759
    %761 = vadd.xlane.f32.xlu0 %v288
    %v762 = vpop.xlane.xlu0 %761
    %763 = vadd.xlane.f32.xlu0 %v289
    %v764 = vpop.xlane.xlu0 %763
    %765 = vadd.xlane.f32.xlu0 %v290
    %v766 = vpop.xlane.xlu0 %765
    %767 = vadd.xlane.f32.xlu0 %v291
    %v768 = vpop.xlane.xlu0 %767
    %769 = vadd.xlane.f32.xlu0 %v292
    %v770 = vpop.xlane.xlu0 %769
    %771 = vadd.xlane.f32.xlu0 %v293
    %v772 = vpop.xlane.xlu0 %771
    %773 = vadd.xlane.f32.xlu0 %v294
    %v774 = vpop.xlane.xlu0 %773
    %775 = vadd.xlane.f32.xlu0 %v295
    %v776 = vpop.xlane.xlu0 %775
    %777 = vadd.xlane.f32.xlu0 %v296
    %v778 = vpop.xlane.xlu0 %777
    %779 = vadd.xlane.f32.xlu0 %v297
    %v780 = vpop.xlane.xlu0 %779
    %781 = vadd.xlane.f32.xlu0 %v298
    %v782 = vpop.xlane.xlu0 %781
    %783 = vadd.xlane.f32.xlu0 %v299
    %v784 = vpop.xlane.xlu0 %783
    %785 = vadd.xlane.f32.xlu0 %v300
    %v786 = vpop.xlane.xlu0 %785
    %787 = vadd.xlane.f32.xlu0 %v301
    %v788 = vpop.xlane.xlu0 %787
    %789 = vadd.xlane.f32.xlu0 %v302
    %v790 = vpop.xlane.xlu0 %789
    %791 = vadd.xlane.f32.xlu0 %v303
    %v792 = vpop.xlane.xlu0 %791
    %793 = vadd.xlane.f32.xlu0 %v304
    %v794 = vpop.xlane.xlu0 %793
    %795 = vadd.xlane.f32.xlu0 %v305
    %v796 = vpop.xlane.xlu0 %795
    %797 = vadd.xlane.f32.xlu0 %v306
    %v798 = vpop.xlane.xlu0 %797
    %799 = vadd.xlane.f32.xlu0 %v307
    %v800 = vpop.xlane.xlu0 %799
    %801 = vadd.xlane.f32.xlu0 %v308
    %v802 = vpop.xlane.xlu0 %801
    %803 = vadd.xlane.f32.xlu0 %v309
    %v804 = vpop.xlane.xlu0 %803
    %805 = vadd.xlane.f32.xlu0 %v310
    %v806 = vpop.xlane.xlu0 %805
    %807 = vadd.xlane.f32.xlu0 %v311
    %v808 = vpop.xlane.xlu0 %807
    %809 = vadd.xlane.f32.xlu0 %v312
    %v810 = vpop.xlane.xlu0 %809
    %811 = vadd.xlane.f32.xlu0 %v313
    %v812 = vpop.xlane.xlu0 %811
    %813 = vadd.xlane.f32.xlu0 %v314
    %v814 = vpop.xlane.xlu0 %813
    %815 = vadd.xlane.f32.xlu0 %v315
    %v816 = vpop.xlane.xlu0 %815
    %817 = vadd.xlane.f32.xlu0 %v316
    %v818 = vpop.xlane.xlu0 %817
    %819 = vadd.xlane.f32.xlu0 %v317
    %v820 = vpop.xlane.xlu0 %819
    %821 = vadd.xlane.f32.xlu0 %v318
    %v822 = vpop.xlane.xlu0 %821
    %823 = vadd.xlane.f32.xlu0 %v319
    %v824 = vpop.xlane.xlu0 %823
    %825 = vadd.xlane.f32.xlu0 %v320
    %v826 = vpop.xlane.xlu0 %825
    %827 = vadd.xlane.f32.xlu0 %v321
    %v828 = vpop.xlane.xlu0 %827
    %829 = vadd.xlane.f32.xlu0 %v322
    %v830 = vpop.xlane.xlu0 %829
    %831 = vadd.xlane.f32.xlu0 %v323
    %v832 = vpop.xlane.xlu0 %831
    %833 = vadd.xlane.f32.xlu0 %v324
    %v834 = vpop.xlane.xlu0 %833
    %835 = vadd.xlane.f32.xlu0 %v325
    %v836 = vpop.xlane.xlu0 %835
    %837 = vadd.xlane.f32.xlu0 %v326
    %v838 = vpop.xlane.xlu0 %837
    %v839 = vld [vmem:[#allocation5] sm:$0xff]
    %v840 = vld [vmem:[#allocation5 + $0x8] sm:$0xff]
    %v841 = vld [vmem:[#allocation5 + $0x10] sm:$0xff]
    %v842 = vld [vmem:[#allocation5 + $0x18] sm:$0xff]
    %v843 = vld [vmem:[#allocation5 + $0x20] sm:$0xff]
    %v844 = vld [vmem:[#allocation5 + $0x28] sm:$0xff]
    %v845 = vld [vmem:[#allocation5 + $0x30] sm:$0xff]
    %v846 = vld [vmem:[#allocation5 + $0x38] sm:$0xff]
    %v847 = vld [vmem:[#allocation5 + $0x40] sm:$0xff]
    %v848 = vld [vmem:[#allocation5 + $0x48] sm:$0xff]
    %v849 = vld [vmem:[#allocation5 + $0x50] sm:$0xff]
    %v850 = vld [vmem:[#allocation5 + $0x58] sm:$0xff]
    %v851 = vld [vmem:[#allocation5 + $0x60] sm:$0xff]
    %v852 = vld [vmem:[#allocation5 + $0x68] sm:$0xff]
    %v853 = vld [vmem:[#allocation5 + $0x70] sm:$0xff]
    %v854 = vld [vmem:[#allocation5 + $0x78] sm:$0xff]
    %855 = vadd.xlane.f32.xlu0 %v839
    %v856 = vpop.xlane.xlu0 %855
    %857 = vadd.xlane.f32.xlu0 %v840
    %v858 = vpop.xlane.xlu0 %857
    %859 = vadd.xlane.f32.xlu0 %v841
    %v860 = vpop.xlane.xlu0 %859
    %861 = vadd.xlane.f32.xlu0 %v842
    %v862 = vpop.xlane.xlu0 %861
    %863 = vadd.xlane.f32.xlu0 %v843
    %v864 = vpop.xlane.xlu0 %863
    %865 = vadd.xlane.f32.xlu0 %v844
    %v866 = vpop.xlane.xlu0 %865
    %867 = vadd.xlane.f32.xlu0 %v845
    %v868 = vpop.xlane.xlu0 %867
    %869 = vadd.xlane.f32.xlu0 %v846
    %v870 = vpop.xlane.xlu0 %869
    %871 = vadd.xlane.f32.xlu0 %v847
    %v872 = vpop.xlane.xlu0 %871
    %873 = vadd.xlane.f32.xlu0 %v848
    %v874 = vpop.xlane.xlu0 %873
    %875 = vadd.xlane.f32.xlu0 %v849
    %v876 = vpop.xlane.xlu0 %875
    %877 = vadd.xlane.f32.xlu0 %v850
    %v878 = vpop.xlane.xlu0 %877
    %879 = vadd.xlane.f32.xlu0 %v851
    %v880 = vpop.xlane.xlu0 %879
    %881 = vadd.xlane.f32.xlu0 %v852
    %v882 = vpop.xlane.xlu0 %881
    %883 = vadd.xlane.f32.xlu0 %v853
    %v884 = vpop.xlane.xlu0 %883
    %885 = vadd.xlane.f32.xlu0 %v854
    %v886 = vpop.xlane.xlu0 %885
    %v887 = vlaneseq
    %v888 = vshrl.u32 %v887, 7
    %v889 = vadd.s32 %v888, 8
    %v890 = vadd.s32 %v888, 16
    %v891 = vadd.s32 %v888, 24
    %v892 = vadd.s32 %v888, 32
    %v893 = vadd.s32 %v888, 40
    %v894 = vadd.s32 %v888, 48
    %v895 = vadd.s32 %v888, 56
    %v896 = vadd.s32 %v888, 64
    %v897 = vadd.s32 %v888, 72
    %v898 = vadd.s32 %v888, 80
    %v899 = vadd.s32 %v888, 88
    %v900 = vadd.s32 %v888, 96
    %v901 = vadd.s32 %v888, 104
    %v902 = vadd.s32 %v888, 112
    %v903 = vadd.s32 %v888, 120
    %v904 = vlaneseq
    %v905 = vand.u32 %v904, 127
    %vm906 = vcmp.ge.s32.totalorder %v888, %v905
    %vm907 = vcmp.ge.s32.totalorder %v889, %v905
    %vm908 = vcmp.ge.s32.totalorder %v890, %v905
    %vm909 = vcmp.ge.s32.totalorder %v891, %v905
    %vm910 = vcmp.ge.s32.totalorder %v892, %v905
    %vm911 = vcmp.ge.s32.totalorder %v893, %v905
    %vm912 = vcmp.ge.s32.totalorder %v894, %v905
    %vm913 = vcmp.ge.s32.totalorder %v895, %v905
    %vm914 = vcmp.ge.s32.totalorder %v896, %v905
    %vm915 = vcmp.ge.s32.totalorder %v897, %v905
    %vm916 = vcmp.ge.s32.totalorder %v898, %v905
    %vm917 = vcmp.ge.s32.totalorder %v899, %v905
    %vm918 = vcmp.ge.s32.totalorder %v900, %v905
    %vm919 = vcmp.ge.s32.totalorder %v901, %v905
    %vm920 = vcmp.ge.s32.totalorder %v902, %v905
    %vm921 = vcmp.ge.s32.totalorder %v903, %v905
    %v922 = vadd.s32 %v905, 4
    %vm923 = vcmp.lt.s32.totalorder %v888, %v922
    %vm924 = vcmp.lt.s32.totalorder %v889, %v922
    %vm925 = vcmp.lt.s32.totalorder %v890, %v922
    %vm926 = vcmp.lt.s32.totalorder %v891, %v922
    %vm927 = vcmp.lt.s32.totalorder %v892, %v922
    %vm928 = vcmp.lt.s32.totalorder %v893, %v922
    %vm929 = vcmp.lt.s32.totalorder %v894, %v922
    %vm930 = vcmp.lt.s32.totalorder %v895, %v922
    %vm931 = vcmp.lt.s32.totalorder %v896, %v922
    %vm932 = vcmp.lt.s32.totalorder %v897, %v922
    %vm933 = vcmp.lt.s32.totalorder %v898, %v922
    %vm934 = vcmp.lt.s32.totalorder %v899, %v922
    %vm935 = vcmp.lt.s32.totalorder %v900, %v922
    %vm936 = vcmp.lt.s32.totalorder %v901, %v922
    %vm937 = vcmp.lt.s32.totalorder %v902, %v922
    %vm938 = vcmp.lt.s32.totalorder %v903, %v922
    %vm939 = vmand %vm906, %vm923
    %vm940 = vmand %vm907, %vm924
    %vm941 = vmand %vm908, %vm925
    %vm942 = vmand %vm909, %vm926
    %vm943 = vmand %vm910, %vm927
    %vm944 = vmand %vm911, %vm928
    %vm945 = vmand %vm912, %vm929
    %vm946 = vmand %vm913, %vm930
    %vm947 = vmand %vm914, %vm931
    %vm948 = vmand %vm915, %vm932
    %vm949 = vmand %vm916, %vm933
    %vm950 = vmand %vm917, %vm934
    %vm951 = vmand %vm918, %vm935
    %vm952 = vmand %vm919, %vm936
    %vm953 = vmand %vm920, %vm937
    %vm954 = vmand %vm921, %vm938
    %v955 = vsel %vm939, 1, 0
    %v956 = vsel %vm940, 1, 0
    %v957 = vsel %vm941, 1, 0
    %v958 = vsel %vm942, 1, 0
    %v959 = vsel %vm943, 1, 0
    %v960 = vsel %vm944, 1, 0
    %v961 = vsel %vm945, 1, 0
    %v962 = vsel %vm946, 1, 0
    %v963 = vsel %vm947, 1, 0
    %v964 = vsel %vm948, 1, 0
    %v965 = vsel %vm949, 1, 0
    %v966 = vsel %vm950, 1, 0
    %v967 = vsel %vm951, 1, 0
    %v968 = vsel %vm952, 1, 0
    %v969 = vsel %vm953, 1, 0
    %v970 = vsel %vm954, 1, 0
    %v971 = vcvt.s32.f32 %v955
    %v972 = vcvt.s32.f32 %v956
    %v973 = vcvt.s32.f32 %v957
    %v974 = vcvt.s32.f32 %v958
    %v975 = vcvt.s32.f32 %v959
    %v976 = vcvt.s32.f32 %v960
    %v977 = vcvt.s32.f32 %v961
    %v978 = vcvt.s32.f32 %v962
    %v979 = vcvt.s32.f32 %v963
    %v980 = vcvt.s32.f32 %v964
    %v981 = vcvt.s32.f32 %v965
    %v982 = vcvt.s32.f32 %v966
    %v983 = vcvt.s32.f32 %v967
    %v984 = vcvt.s32.f32 %v968
    %v985 = vcvt.s32.f32 %v969
    %v986 = vcvt.s32.f32 %v970
    %v987 = vadd.s32 %v888, 128
    %vm988 = vcmp.ge.s32.totalorder %v987, %v905
    %vm989 = vcmp.lt.s32.totalorder %v987, %v922
    %vm990 = vmand %vm988, %vm989
    %v991 = vsel %vm990, 1, 0
    %v992 = vcvt.s32.f32 %v991
    %v1009 = vlaneseq
    %v1010 = vshrl.u32 %v1009, 7
    %v1011 = vsub.s32 %v905, %v1010
    %v1012 = vrot.slane %v856, %v1011
    %v1013 = vlaneseq
    %v1014 = vshrl.u32 %v1013, 7
    %v1015 = vsub.s32 %v905, %v1014
    %v1016 = vrot.slane %v858, %v1015
    %v1017 = vlaneseq
    %v1018 = vshrl.u32 %v1017, 7
    %v1019 = vsub.s32 %v905, %v1018
    %v1020 = vrot.slane %v860, %v1019
    %v1021 = vlaneseq
    %v1022 = vshrl.u32 %v1021, 7
    %v1023 = vsub.s32 %v905, %v1022
    %v1024 = vrot.slane %v862, %v1023
    %v1025 = vlaneseq
    %v1026 = vshrl.u32 %v1025, 7
    %v1027 = vsub.s32 %v905, %v1026
    %v1028 = vrot.slane %v864, %v1027
    %v1029 = vlaneseq
    %v1030 = vshrl.u32 %v1029, 7
    %v1031 = vsub.s32 %v905, %v1030
    %v1032 = vrot.slane %v866, %v1031
    %v1033 = vlaneseq
    %v1034 = vshrl.u32 %v1033, 7
    %v1035 = vsub.s32 %v905, %v1034
    %v1036 = vrot.slane %v868, %v1035
    %v1037 = vlaneseq
    %v1038 = vshrl.u32 %v1037, 7
    %v1039 = vsub.s32 %v905, %v1038
    %v1040 = vrot.slane %v870, %v1039
    %v1041 = vlaneseq
    %v1042 = vshrl.u32 %v1041, 7
    %v1043 = vsub.s32 %v905, %v1042
    %v1044 = vrot.slane %v872, %v1043
    %v1045 = vlaneseq
    %v1046 = vshrl.u32 %v1045, 7
    %v1047 = vsub.s32 %v905, %v1046
    %v1048 = vrot.slane %v874, %v1047
    %v1049 = vlaneseq
    %v1050 = vshrl.u32 %v1049, 7
    %v1051 = vsub.s32 %v905, %v1050
    %v1052 = vrot.slane %v876, %v1051
    %v1053 = vlaneseq
    %v1054 = vshrl.u32 %v1053, 7
    %v1055 = vsub.s32 %v905, %v1054
    %v1056 = vrot.slane %v878, %v1055
    %v1057 = vlaneseq
    %v1058 = vshrl.u32 %v1057, 7
    %v1059 = vsub.s32 %v905, %v1058
    %v1060 = vrot.slane %v880, %v1059
    %v1061 = vlaneseq
    %v1062 = vshrl.u32 %v1061, 7
    %v1063 = vsub.s32 %v905, %v1062
    %v1064 = vrot.slane %v882, %v1063
    %v1065 = vlaneseq
    %v1066 = vshrl.u32 %v1065, 7
    %v1067 = vsub.s32 %v905, %v1066
    %v1068 = vrot.slane %v884, %v1067
    %v1069 = vlaneseq
    %v1070 = vshrl.u32 %v1069, 7
    %v1071 = vsub.s32 %v905, %v1070
    %v1072 = vrot.slane %v886, %v1071
    %vm1073 = vcmask 1041409
    %v1074 = vsel %vm1073, %v1016, %v1012
    %vm1075 = vcmask 1042434
    %v1076 = vsel %vm1075, %v1020, %v1074
    %vm1077 = vcmask 1043459
    %v1078 = vsel %vm1077, %v1024, %v1076
    %vm1079 = vcmask 1044484
    %v1080 = vsel %vm1079, %v1028, %v1078
    %vm1081 = vcmask 1045509
    %v1082 = vsel %vm1081, %v1032, %v1080
    %vm1083 = vcmask 1046534
    %v1084 = vsel %vm1083, %v1036, %v1082
    %vm1085 = vcmask 1047559
    %v1086 = vsel %vm1085, %v1040, %v1084
    %v1087 = vsel %vm1073, %v1048, %v1044
    %v1088 = vsel %vm1075, %v1052, %v1087
    %v1089 = vsel %vm1077, %v1056, %v1088
    %v1090 = vsel %vm1079, %v1060, %v1089
    %v1091 = vsel %vm1081, %v1064, %v1090
    %v1092 = vsel %vm1083, %v1068, %v1091
    %v1093 = vsel %vm1085, %v1072, %v1092
    %vm1094 = vcmask 64512
    %v1095 = vsel %vm1094, %v1086, 0
    %v1097 = vsel %vm1094, %v1093, 0
    %1099 = vmatprep.subr.mxu0 0.0
    %1100 = vmatpush1.msra.mxu0 %v992
    %1101 = vmatprep.subr.mxu0 0.0
    %1102 = vmatpush1.msra.mxu0 0.0
    %1103 = vmatprep.subr.mxu0 0.0
    %1104 = vmatpush1.msra.mxu0 0.0
    %1105 = vmatprep.subr.mxu0 0.0
    %1106 = vmatpush1.msra.mxu0 0.0
    %1107 = vmatprep.subr.mxu0 0.0
    %1108 = vmatpush1.msra.mxu0 0.0
    %1109 = vmatprep.subr.mxu0 0.0
    %1110 = vmatpush1.msra.mxu0 0.0
    %1111 = vmatprep.subr.mxu0 0.0
    %1112 = vmatpush1.msra.mxu0 0.0
    %1113 = vmatprep.subr.mxu0 0.0
    %1114 = vmatpush1.msra.mxu0 0.0
    %1115 = vmatprep.subr.mxu0 0.0
    %1116 = vmatpush1.msra.mxu0 0.0
    %1117 = vmatprep.subr.mxu0 0.0
    %1118 = vmatpush1.msra.mxu0 0.0
    %1119 = vmatprep.subr.mxu0 0.0
    %1120 = vmatpush1.msra.mxu0 0.0
    %1121 = vmatprep.subr.mxu0 0.0
    %1122 = vmatpush1.msra.mxu0 0.0
    %1123 = vmatprep.subr.mxu0 0.0
    %1124 = vmatpush1.msra.mxu0 0.0
    %1125 = vmatprep.subr.mxu0 0.0
    %1126 = vmatpush1.msra.mxu0 0.0
    %1127 = vmatprep.subr.mxu0 0.0
    %1128 = vmatpush1.msra.mxu0 0.0
    %1129 = vmatprep.subr.mxu0 0.0
    %1130 = vmatpush1.msra.mxu0 0.0
    %1131 = vmatprep.subr.mxu0 0.0
    %1132 = vmatpush1.msra.mxu0 0.0
    %1133 = vmatprep.subr.mxu0 0.0
    %1134 = vmatpush1.msra.mxu0 0.0
    %1135 = vmatprep.subr.mxu0 0.0
    %1136 = vmatpush1.msra.mxu0 0.0
    %1137 = vmatprep.subr.mxu0 0.0
    %1138 = vmatpush1.msra.mxu0 0.0
    %1139 = vmatprep.subr.mxu0 0.0
    %1140 = vmatpush1.msra.mxu0 0.0
    %1141 = vmatprep.subr.mxu0 0.0
    %1142 = vmatpush1.msra.mxu0 0.0
    %1143 = vmatprep.subr.mxu0 0.0
    %1144 = vmatpush1.msra.mxu0 0.0
    %1145 = vmatprep.subr.mxu0 0.0
    %1146 = vmatpush1.msra.mxu0 0.0
    %1147 = vmatprep.subr.mxu0 0.0
    %1148 = vmatpush1.msra.mxu0 0.0
    %1149 = vmatprep.subr.mxu0 0.0
    %1150 = vmatpush1.msra.mxu0 0.0
    %1151 = vmatprep.subr.mxu0 0.0
    %1152 = vmatpush1.msra.mxu0 0.0
    %1153 = vmatprep.subr.mxu0 0.0
    %1154 = vmatpush1.msra.mxu0 0.0
    %1155 = vmatprep.subr.mxu0 0.0
    %1156 = vmatpush1.msra.mxu0 0.0
    %1157 = vmatprep.subr.mxu0 0.0
    %1158 = vmatpush1.msra.mxu0 0.0
    %1159 = vmatprep.subr.mxu0 0.0
    %1160 = vmatpush1.msra.mxu0 0.0
    %1161 = vmatprep.subr.mxu0 0.0
    %1162 = vmatpush1.msra.mxu0 0.0
    %1163 = vmatprep.mubr.f32.mxu0 0.0
    %1164 = vmatmul.mubr.f32.gmra.mrb[0].mxu0 %v1095
    %v1165 = vpop.f32.mrb[0].mxu0
    %v1166 = vadd.f32 0.0, %v1165
    %v1167 = vpop.f32.mrb[0].mxu0
    %1168 = vmatprep.mubr.f32.mxu0 0.0
    %1169 = vmatmul.mubr.f32.gmra.mrb[0].mxu0 %v1097
    %v1170 = vpop.f32.mrb[0].mxu0
    %v1171 = vadd.f32 0.0, %v1170
    %v1172 = vpop.f32.mrb[0].mxu0
    %1173 = vdwg.mxu0
    %v1430 = vlaneseq
    %v1431 = vshrl.u32 %v1430, 7
    %v1432 = vsub.s32 %v905, %v1431
    %v1433 = vrot.slane %v328, %v1432
    %v1434 = vadd.s32 %v905, 4294967288
    %v1435 = vlaneseq
    %v1436 = vshrl.u32 %v1435, 7
    %v1437 = vsub.s32 %v1434, %v1436
    %v1438 = vrot.slane %v330, %v1437
    %vm1439 = vcmask 130112
    %v1440 = vsel %vm1439, %v1438, %v1433
    %v1441 = vadd.s32 %v905, 4294967280
    %v1442 = vlaneseq
    %v1443 = vshrl.u32 %v1442, 7
    %v1444 = vsub.s32 %v1441, %v1443
    %v1445 = vrot.slane %v332, %v1444
    %vm1446 = vcmask 195712
    %v1447 = vsel %vm1446, %v1445, %v1440
    %v1448 = vadd.s32 %v905, 4294967272
    %v1449 = vlaneseq
    %v1450 = vshrl.u32 %v1449, 7
    %v1451 = vsub.s32 %v1448, %v1450
    %v1452 = vrot.slane %v334, %v1451
    %vm1453 = vcmask 261312
    %v1454 = vsel %vm1453, %v1452, %v1447
    %v1455 = vadd.s32 %v905, 4294967264
    %v1456 = vlaneseq
    %v1457 = vshrl.u32 %v1456, 7
    %v1458 = vsub.s32 %v1455, %v1457
    %v1459 = vrot.slane %v336, %v1458
    %vm1460 = vcmask 326912
    %v1461 = vsel %vm1460, %v1459, %v1454
    %v1462 = vadd.s32 %v905, 4294967256
    %v1463 = vlaneseq
    %v1464 = vshrl.u32 %v1463, 7
    %v1465 = vsub.s32 %v1462, %v1464
    %v1466 = vrot.slane %v338, %v1465
    %vm1467 = vcmask 392512
    %v1468 = vsel %vm1467, %v1466, %v1461
    %v1469 = vadd.s32 %v905, 4294967248
    %v1470 = vlaneseq
    %v1471 = vshrl.u32 %v1470, 7
    %v1472 = vsub.s32 %v1469, %v1471
    %v1473 = vrot.slane %v340, %v1472
    %vm1474 = vcmask 458112
    %v1475 = vsel %vm1474, %v1473, %v1468
    %v1476 = vadd.s32 %v905, 4294967240
    %v1477 = vlaneseq
    %v1478 = vshrl.u32 %v1477, 7
    %v1479 = vsub.s32 %v1476, %v1478
    %v1480 = vrot.slane %v342, %v1479
    %vm1481 = vcmask 523712
    %v1482 = vsel %vm1481, %v1480, %v1475
    %v1483 = vadd.s32 %v905, 4294967232
    %v1484 = vlaneseq
    %v1485 = vshrl.u32 %v1484, 7
    %v1486 = vsub.s32 %v1483, %v1485
    %v1487 = vrot.slane %v344, %v1486
    %vm1488 = vcmask 589312
    %v1489 = vsel %vm1488, %v1487, %v1482
    %v1490 = vadd.s32 %v905, 4294967224
    %v1491 = vlaneseq
    %v1492 = vshrl.u32 %v1491, 7
    %v1493 = vsub.s32 %v1490, %v1492
    %v1494 = vrot.slane %v346, %v1493
    %vm1495 = vcmask 654912
    %v1496 = vsel %vm1495, %v1494, %v1489
    %v1497 = vadd.s32 %v905, 4294967216
    %v1498 = vlaneseq
    %v1499 = vshrl.u32 %v1498, 7
    %v1500 = vsub.s32 %v1497, %v1499
    %v1501 = vrot.slane %v348, %v1500
    %vm1502 = vcmask 720512
    %v1503 = vsel %vm1502, %v1501, %v1496
    %v1504 = vadd.s32 %v905, 4294967208
    %v1505 = vlaneseq
    %v1506 = vshrl.u32 %v1505, 7
    %v1507 = vsub.s32 %v1504, %v1506
    %v1508 = vrot.slane %v350, %v1507
    %vm1509 = vcmask 786112
    %v1510 = vsel %vm1509, %v1508, %v1503
    %v1511 = vadd.s32 %v905, 4294967200
    %v1512 = vlaneseq
    %v1513 = vshrl.u32 %v1512, 7
    %v1514 = vsub.s32 %v1511, %v1513
    %v1515 = vrot.slane %v352, %v1514
    %vm1516 = vcmask 851712
    %v1517 = vsel %vm1516, %v1515, %v1510
    %v1518 = vadd.s32 %v905, 4294967192
    %v1519 = vlaneseq
    %v1520 = vshrl.u32 %v1519, 7
    %v1521 = vsub.s32 %v1518, %v1520
    %v1522 = vrot.slane %v354, %v1521
    %vm1523 = vcmask 917312
    %v1524 = vsel %vm1523, %v1522, %v1517
    %v1525 = vadd.s32 %v905, 4294967184
    %v1526 = vlaneseq
    %v1527 = vshrl.u32 %v1526, 7
    %v1528 = vsub.s32 %v1525, %v1527
    %v1529 = vrot.slane %v356, %v1528
    %vm1530 = vcmask 982912
    %v1531 = vsel %vm1530, %v1529, %v1524
    %v1532 = vadd.s32 %v905, 4294967176
    %v1533 = vlaneseq
    %v1534 = vshrl.u32 %v1533, 7
    %v1535 = vsub.s32 %v1532, %v1534
    %v1536 = vrot.slane %v358, %v1535
    %vm1537 = vcmask 1048512
    %v1538 = vsel %vm1537, %v1536, %v1531
    %v1539 = vlaneseq
    %v1540 = vshrl.u32 %v1539, 7
    %v1541 = vsub.s32 %v905, %v1540
    %v1542 = vrot.slane %v360, %v1541
    %v1543 = vlaneseq
    %v1544 = vshrl.u32 %v1543, 7
    %v1545 = vsub.s32 %v1434, %v1544
    %v1546 = vrot.slane %v362, %v1545
    %v1547 = vsel %vm1439, %v1546, %v1542
    %v1548 = vlaneseq
    %v1549 = vshrl.u32 %v1548, 7
    %v1550 = vsub.s32 %v1441, %v1549
    %v1551 = vrot.slane %v364, %v1550
    %v1552 = vsel %vm1446, %v1551, %v1547
    %v1553 = vlaneseq
    %v1554 = vshrl.u32 %v1553, 7
    %v1555 = vsub.s32 %v1448, %v1554
    %v1556 = vrot.slane %v366, %v1555
    %v1557 = vsel %vm1453, %v1556, %v1552
    %v1558 = vlaneseq
    %v1559 = vshrl.u32 %v1558, 7
    %v1560 = vsub.s32 %v1455, %v1559
    %v1561 = vrot.slane %v368, %v1560
    %v1562 = vsel %vm1460, %v1561, %v1557
    %v1563 = vlaneseq
    %v1564 = vshrl.u32 %v1563, 7
    %v1565 = vsub.s32 %v1462, %v1564
    %v1566 = vrot.slane %v370, %v1565
    %v1567 = vsel %vm1467, %v1566, %v1562
    %v1568 = vlaneseq
    %v1569 = vshrl.u32 %v1568, 7
    %v1570 = vsub.s32 %v1469, %v1569
    %v1571 = vrot.slane %v372, %v1570
    %v1572 = vsel %vm1474, %v1571, %v1567
    %v1573 = vlaneseq
    %v1574 = vshrl.u32 %v1573, 7
    %v1575 = vsub.s32 %v1476, %v1574
    %v1576 = vrot.slane %v374, %v1575
    %v1577 = vsel %vm1481, %v1576, %v1572
    %v1578 = vlaneseq
    %v1579 = vshrl.u32 %v1578, 7
    %v1580 = vsub.s32 %v1483, %v1579
    %v1581 = vrot.slane %v376, %v1580
    %v1582 = vsel %vm1488, %v1581, %v1577
    %v1583 = vlaneseq
    %v1584 = vshrl.u32 %v1583, 7
    %v1585 = vsub.s32 %v1490, %v1584
    %v1586 = vrot.slane %v378, %v1585
    %v1587 = vsel %vm1495, %v1586, %v1582
    %v1588 = vlaneseq
    %v1589 = vshrl.u32 %v1588, 7
    %v1590 = vsub.s32 %v1497, %v1589
    %v1591 = vrot.slane %v380, %v1590
    %v1592 = vsel %vm1502, %v1591, %v1587
    %v1593 = vlaneseq
    %v1594 = vshrl.u32 %v1593, 7
    %v1595 = vsub.s32 %v1504, %v1594
    %v1596 = vrot.slane %v382, %v1595
    %v1597 = vsel %vm1509, %v1596, %v1592
    %v1598 = vlaneseq
    %v1599 = vshrl.u32 %v1598, 7
    %v1600 = vsub.s32 %v1511, %v1599
    %v1601 = vrot.slane %v384, %v1600
    %v1602 = vsel %vm1516, %v1601, %v1597
    %v1603 = vlaneseq
    %v1604 = vshrl.u32 %v1603, 7
    %v1605 = vsub.s32 %v1518, %v1604
    %v1606 = vrot.slane %v386, %v1605
    %v1607 = vsel %vm1523, %v1606, %v1602
    %v1608 = vlaneseq
    %v1609 = vshrl.u32 %v1608, 7
    %v1610 = vsub.s32 %v1525, %v1609
    %v1611 = vrot.slane %v388, %v1610
    %v1612 = vsel %vm1530, %v1611, %v1607
    %v1613 = vlaneseq
    %v1614 = vshrl.u32 %v1613, 7
    %v1615 = vsub.s32 %v1532, %v1614
    %v1616 = vrot.slane %v390, %v1615
    %v1617 = vsel %vm1537, %v1616, %v1612
    %v1618 = vlaneseq
    %v1619 = vshrl.u32 %v1618, 7
    %v1620 = vsub.s32 %v905, %v1619
    %v1621 = vrot.slane %v392, %v1620
    %v1622 = vlaneseq
    %v1623 = vshrl.u32 %v1622, 7
    %v1624 = vsub.s32 %v1434, %v1623
    %v1625 = vrot.slane %v394, %v1624
    %v1626 = vsel %vm1439, %v1625, %v1621
    %v1627 = vlaneseq
    %v1628 = vshrl.u32 %v1627, 7
    %v1629 = vsub.s32 %v1441, %v1628
    %v1630 = vrot.slane %v396, %v1629
    %v1631 = vsel %vm1446, %v1630, %v1626
    %v1632 = vlaneseq
    %v1633 = vshrl.u32 %v1632, 7
    %v1634 = vsub.s32 %v1448, %v1633
    %v1635 = vrot.slane %v398, %v1634
    %v1636 = vsel %vm1453, %v1635, %v1631
    %v1637 = vlaneseq
    %v1638 = vshrl.u32 %v1637, 7
    %v1639 = vsub.s32 %v1455, %v1638
    %v1640 = vrot.slane %v400, %v1639
    %v1641 = vsel %vm1460, %v1640, %v1636
    %v1642 = vlaneseq
    %v1643 = vshrl.u32 %v1642, 7
    %v1644 = vsub.s32 %v1462, %v1643
    %v1645 = vrot.slane %v402, %v1644
    %v1646 = vsel %vm1467, %v1645, %v1641
    %v1647 = vlaneseq
    %v1648 = vshrl.u32 %v1647, 7
    %v1649 = vsub.s32 %v1469, %v1648
    %v1650 = vrot.slane %v404, %v1649
    %v1651 = vsel %vm1474, %v1650, %v1646
    %v1652 = vlaneseq
    %v1653 = vshrl.u32 %v1652, 7
    %v1654 = vsub.s32 %v1476, %v1653
    %v1655 = vrot.slane %v406, %v1654
    %v1656 = vsel %vm1481, %v1655, %v1651
    %v1657 = vlaneseq
    %v1658 = vshrl.u32 %v1657, 7
    %v1659 = vsub.s32 %v1483, %v1658
    %v1660 = vrot.slane %v408, %v1659
    %v1661 = vsel %vm1488, %v1660, %v1656
    %v1662 = vlaneseq
    %v1663 = vshrl.u32 %v1662, 7
    %v1664 = vsub.s32 %v1490, %v1663
    %v1665 = vrot.slane %v410, %v1664
    %v1666 = vsel %vm1495, %v1665, %v1661
    %v1667 = vlaneseq
    %v1668 = vshrl.u32 %v1667, 7
    %v1669 = vsub.s32 %v1497, %v1668
    %v1670 = vrot.slane %v412, %v1669
    %v1671 = vsel %vm1502, %v1670, %v1666
    %v1672 = vlaneseq
    %v1673 = vshrl.u32 %v1672, 7
    %v1674 = vsub.s32 %v1504, %v1673
    %v1675 = vrot.slane %v414, %v1674
    %v1676 = vsel %vm1509, %v1675, %v1671
    %v1677 = vlaneseq
    %v1678 = vshrl.u32 %v1677, 7
    %v1679 = vsub.s32 %v1511, %v1678
    %v1680 = vrot.slane %v416, %v1679
    %v1681 = vsel %vm1516, %v1680, %v1676
    %v1682 = vlaneseq
    %v1683 = vshrl.u32 %v1682, 7
    %v1684 = vsub.s32 %v1518, %v1683
    %v1685 = vrot.slane %v418, %v1684
    %v1686 = vsel %vm1523, %v1685, %v1681
    %v1687 = vlaneseq
    %v1688 = vshrl.u32 %v1687, 7
    %v1689 = vsub.s32 %v1525, %v1688
    %v1690 = vrot.slane %v420, %v1689
    %v1691 = vsel %vm1530, %v1690, %v1686
    %v1692 = vlaneseq
    %v1693 = vshrl.u32 %v1692, 7
    %v1694 = vsub.s32 %v1532, %v1693
    %v1695 = vrot.slane %v422, %v1694
    %v1696 = vsel %vm1537, %v1695, %v1691
    %v1697 = vlaneseq
    %v1698 = vshrl.u32 %v1697, 7
    %v1699 = vsub.s32 %v905, %v1698
    %v1700 = vrot.slane %v424, %v1699
    %v1701 = vlaneseq
    %v1702 = vshrl.u32 %v1701, 7
    %v1703 = vsub.s32 %v1434, %v1702
    %v1704 = vrot.slane %v426, %v1703
    %v1705 = vsel %vm1439, %v1704, %v1700
    %v1706 = vlaneseq
    %v1707 = vshrl.u32 %v1706, 7
    %v1708 = vsub.s32 %v1441, %v1707
    %v1709 = vrot.slane %v428, %v1708
    %v1710 = vsel %vm1446, %v1709, %v1705
    %v1711 = vlaneseq
    %v1712 = vshrl.u32 %v1711, 7
    %v1713 = vsub.s32 %v1448, %v1712
    %v1714 = vrot.slane %v430, %v1713
    %v1715 = vsel %vm1453, %v1714, %v1710
    %v1716 = vlaneseq
    %v1717 = vshrl.u32 %v1716, 7
    %v1718 = vsub.s32 %v1455, %v1717
    %v1719 = vrot.slane %v432, %v1718
    %v1720 = vsel %vm1460, %v1719, %v1715
    %v1721 = vlaneseq
    %v1722 = vshrl.u32 %v1721, 7
    %v1723 = vsub.s32 %v1462, %v1722
    %v1724 = vrot.slane %v434, %v1723
    %v1725 = vsel %vm1467, %v1724, %v1720
    %v1726 = vlaneseq
    %v1727 = vshrl.u32 %v1726, 7
    %v1728 = vsub.s32 %v1469, %v1727
    %v1729 = vrot.slane %v436, %v1728
    %v1730 = vsel %vm1474, %v1729, %v1725
    %v1731 = vlaneseq
    %v1732 = vshrl.u32 %v1731, 7
    %v1733 = vsub.s32 %v1476, %v1732
    %v1734 = vrot.slane %v438, %v1733
    %v1735 = vsel %vm1481, %v1734, %v1730
    %v1736 = vlaneseq
    %v1737 = vshrl.u32 %v1736, 7
    %v1738 = vsub.s32 %v1483, %v1737
    %v1739 = vrot.slane %v440, %v1738
    %v1740 = vsel %vm1488, %v1739, %v1735
    %v1741 = vlaneseq
    %v1742 = vshrl.u32 %v1741, 7
    %v1743 = vsub.s32 %v1490, %v1742
    %v1744 = vrot.slane %v442, %v1743
    %v1745 = vsel %vm1495, %v1744, %v1740
    %v1746 = vlaneseq
    %v1747 = vshrl.u32 %v1746, 7
    %v1748 = vsub.s32 %v1497, %v1747
    %v1749 = vrot.slane %v444, %v1748
    %v1750 = vsel %vm1502, %v1749, %v1745
    %v1751 = vlaneseq
    %v1752 = vshrl.u32 %v1751, 7
    %v1753 = vsub.s32 %v1504, %v1752
    %v1754 = vrot.slane %v446, %v1753
    %v1755 = vsel %vm1509, %v1754, %v1750
    %v1756 = vlaneseq
    %v1757 = vshrl.u32 %v1756, 7
    %v1758 = vsub.s32 %v1511, %v1757
    %v1759 = vrot.slane %v448, %v1758
    %v1760 = vsel %vm1516, %v1759, %v1755
    %v1761 = vlaneseq
    %v1762 = vshrl.u32 %v1761, 7
    %v1763 = vsub.s32 %v1518, %v1762
    %v1764 = vrot.slane %v450, %v1763
    %v1765 = vsel %vm1523, %v1764, %v1760
    %v1766 = vlaneseq
    %v1767 = vshrl.u32 %v1766, 7
    %v1768 = vsub.s32 %v1525, %v1767
    %v1769 = vrot.slane %v452, %v1768
    %v1770 = vsel %vm1530, %v1769, %v1765
    %v1771 = vlaneseq
    %v1772 = vshrl.u32 %v1771, 7
    %v1773 = vsub.s32 %v1532, %v1772
    %v1774 = vrot.slane %v454, %v1773
    %v1775 = vsel %vm1537, %v1774, %v1770
    %v1776 = vlaneseq
    %v1777 = vshrl.u32 %v1776, 7
    %v1778 = vsub.s32 %v905, %v1777
    %v1779 = vrot.slane %v456, %v1778
    %v1780 = vlaneseq
    %v1781 = vshrl.u32 %v1780, 7
    %v1782 = vsub.s32 %v1434, %v1781
    %v1783 = vrot.slane %v458, %v1782
    %v1784 = vsel %vm1439, %v1783, %v1779
    %v1785 = vlaneseq
    %v1786 = vshrl.u32 %v1785, 7
    %v1787 = vsub.s32 %v1441, %v1786
    %v1788 = vrot.slane %v460, %v1787
    %v1789 = vsel %vm1446, %v1788, %v1784
    %v1790 = vlaneseq
    %v1791 = vshrl.u32 %v1790, 7
    %v1792 = vsub.s32 %v1448, %v1791
    %v1793 = vrot.slane %v462, %v1792
    %v1794 = vsel %vm1453, %v1793, %v1789
    %v1795 = vlaneseq
    %v1796 = vshrl.u32 %v1795, 7
    %v1797 = vsub.s32 %v1455, %v1796
    %v1798 = vrot.slane %v464, %v1797
    %v1799 = vsel %vm1460, %v1798, %v1794
    %v1800 = vlaneseq
    %v1801 = vshrl.u32 %v1800, 7
    %v1802 = vsub.s32 %v1462, %v1801
    %v1803 = vrot.slane %v466, %v1802
    %v1804 = vsel %vm1467, %v1803, %v1799
    %v1805 = vlaneseq
    %v1806 = vshrl.u32 %v1805, 7
    %v1807 = vsub.s32 %v1469, %v1806
    %v1808 = vrot.slane %v468, %v1807
    %v1809 = vsel %vm1474, %v1808, %v1804
    %v1810 = vlaneseq
    %v1811 = vshrl.u32 %v1810, 7
    %v1812 = vsub.s32 %v1476, %v1811
    %v1813 = vrot.slane %v470, %v1812
    %v1814 = vsel %vm1481, %v1813, %v1809
    %v1815 = vlaneseq
    %v1816 = vshrl.u32 %v1815, 7
    %v1817 = vsub.s32 %v1483, %v1816
    %v1818 = vrot.slane %v472, %v1817
    %v1819 = vsel %vm1488, %v1818, %v1814
    %v1820 = vlaneseq
    %v1821 = vshrl.u32 %v1820, 7
    %v1822 = vsub.s32 %v1490, %v1821
    %v1823 = vrot.slane %v474, %v1822
    %v1824 = vsel %vm1495, %v1823, %v1819
    %v1825 = vlaneseq
    %v1826 = vshrl.u32 %v1825, 7
    %v1827 = vsub.s32 %v1497, %v1826
    %v1828 = vrot.slane %v476, %v1827
    %v1829 = vsel %vm1502, %v1828, %v1824
    %v1830 = vlaneseq
    %v1831 = vshrl.u32 %v1830, 7
    %v1832 = vsub.s32 %v1504, %v1831
    %v1833 = vrot.slane %v478, %v1832
    %v1834 = vsel %vm1509, %v1833, %v1829
    %v1835 = vlaneseq
    %v1836 = vshrl.u32 %v1835, 7
    %v1837 = vsub.s32 %v1511, %v1836
    %v1838 = vrot.slane %v480, %v1837
    %v1839 = vsel %vm1516, %v1838, %v1834
    %v1840 = vlaneseq
    %v1841 = vshrl.u32 %v1840, 7
    %v1842 = vsub.s32 %v1518, %v1841
    %v1843 = vrot.slane %v482, %v1842
    %v1844 = vsel %vm1523, %v1843, %v1839
    %v1845 = vlaneseq
    %v1846 = vshrl.u32 %v1845, 7
    %v1847 = vsub.s32 %v1525, %v1846
    %v1848 = vrot.slane %v484, %v1847
    %v1849 = vsel %vm1530, %v1848, %v1844
    %v1850 = vlaneseq
    %v1851 = vshrl.u32 %v1850, 7
    %v1852 = vsub.s32 %v1532, %v1851
    %v1853 = vrot.slane %v486, %v1852
    %v1854 = vsel %vm1537, %v1853, %v1849
    %v1855 = vlaneseq
    %v1856 = vshrl.u32 %v1855, 7
    %v1857 = vsub.s32 %v905, %v1856
    %v1858 = vrot.slane %v488, %v1857
    %v1859 = vlaneseq
    %v1860 = vshrl.u32 %v1859, 7
    %v1861 = vsub.s32 %v1434, %v1860
    %v1862 = vrot.slane %v490, %v1861
    %v1863 = vsel %vm1439, %v1862, %v1858
    %v1864 = vlaneseq
    %v1865 = vshrl.u32 %v1864, 7
    %v1866 = vsub.s32 %v1441, %v1865
    %v1867 = vrot.slane %v492, %v1866
    %v1868 = vsel %vm1446, %v1867, %v1863
    %v1869 = vlaneseq
    %v1870 = vshrl.u32 %v1869, 7
    %v1871 = vsub.s32 %v1448, %v1870
    %v1872 = vrot.slane %v494, %v1871
    %v1873 = vsel %vm1453, %v1872, %v1868
    %v1874 = vlaneseq
    %v1875 = vshrl.u32 %v1874, 7
    %v1876 = vsub.s32 %v1455, %v1875
    %v1877 = vrot.slane %v496, %v1876
    %v1878 = vsel %vm1460, %v1877, %v1873
    %v1879 = vlaneseq
    %v1880 = vshrl.u32 %v1879, 7
    %v1881 = vsub.s32 %v1462, %v1880
    %v1882 = vrot.slane %v498, %v1881
    %v1883 = vsel %vm1467, %v1882, %v1878
    %v1884 = vlaneseq
    %v1885 = vshrl.u32 %v1884, 7
    %v1886 = vsub.s32 %v1469, %v1885
    %v1887 = vrot.slane %v500, %v1886
    %v1888 = vsel %vm1474, %v1887, %v1883
    %v1889 = vlaneseq
    %v1890 = vshrl.u32 %v1889, 7
    %v1891 = vsub.s32 %v1476, %v1890
    %v1892 = vrot.slane %v502, %v1891
    %v1893 = vsel %vm1481, %v1892, %v1888
    %v1894 = vlaneseq
    %v1895 = vshrl.u32 %v1894, 7
    %v1896 = vsub.s32 %v1483, %v1895
    %v1897 = vrot.slane %v504, %v1896
    %v1898 = vsel %vm1488, %v1897, %v1893
    %v1899 = vlaneseq
    %v1900 = vshrl.u32 %v1899, 7
    %v1901 = vsub.s32 %v1490, %v1900
    %v1902 = vrot.slane %v506, %v1901
    %v1903 = vsel %vm1495, %v1902, %v1898
    %v1904 = vlaneseq
    %v1905 = vshrl.u32 %v1904, 7
    %v1906 = vsub.s32 %v1497, %v1905
    %v1907 = vrot.slane %v508, %v1906
    %v1908 = vsel %vm1502, %v1907, %v1903
    %v1909 = vlaneseq
    %v1910 = vshrl.u32 %v1909, 7
    %v1911 = vsub.s32 %v1504, %v1910
    %v1912 = vrot.slane %v510, %v1911
    %v1913 = vsel %vm1509, %v1912, %v1908
    %v1914 = vlaneseq
    %v1915 = vshrl.u32 %v1914, 7
    %v1916 = vsub.s32 %v1511, %v1915
    %v1917 = vrot.slane %v512, %v1916
    %v1918 = vsel %vm1516, %v1917, %v1913
    %v1919 = vlaneseq
    %v1920 = vshrl.u32 %v1919, 7
    %v1921 = vsub.s32 %v1518, %v1920
    %v1922 = vrot.slane %v514, %v1921
    %v1923 = vsel %vm1523, %v1922, %v1918
    %v1924 = vlaneseq
    %v1925 = vshrl.u32 %v1924, 7
    %v1926 = vsub.s32 %v1525, %v1925
    %v1927 = vrot.slane %v516, %v1926
    %v1928 = vsel %vm1530, %v1927, %v1923
    %v1929 = vlaneseq
    %v1930 = vshrl.u32 %v1929, 7
    %v1931 = vsub.s32 %v1532, %v1930
    %v1932 = vrot.slane %v518, %v1931
    %v1933 = vsel %vm1537, %v1932, %v1928
    %v1934 = vlaneseq
    %v1935 = vshrl.u32 %v1934, 7
    %v1936 = vsub.s32 %v905, %v1935
    %v1937 = vrot.slane %v520, %v1936
    %v1938 = vlaneseq
    %v1939 = vshrl.u32 %v1938, 7
    %v1940 = vsub.s32 %v1434, %v1939
    %v1941 = vrot.slane %v522, %v1940
    %v1942 = vsel %vm1439, %v1941, %v1937
    %v1943 = vlaneseq
    %v1944 = vshrl.u32 %v1943, 7
    %v1945 = vsub.s32 %v1441, %v1944
    %v1946 = vrot.slane %v524, %v1945
    %v1947 = vsel %vm1446, %v1946, %v1942
    %v1948 = vlaneseq
    %v1949 = vshrl.u32 %v1948, 7
    %v1950 = vsub.s32 %v1448, %v1949
    %v1951 = vrot.slane %v526, %v1950
    %v1952 = vsel %vm1453, %v1951, %v1947
    %v1953 = vlaneseq
    %v1954 = vshrl.u32 %v1953, 7
    %v1955 = vsub.s32 %v1455, %v1954
    %v1956 = vrot.slane %v528, %v1955
    %v1957 = vsel %vm1460, %v1956, %v1952
    %v1958 = vlaneseq
    %v1959 = vshrl.u32 %v1958, 7
    %v1960 = vsub.s32 %v1462, %v1959
    %v1961 = vrot.slane %v530, %v1960
    %v1962 = vsel %vm1467, %v1961, %v1957
    %v1963 = vlaneseq
    %v1964 = vshrl.u32 %v1963, 7
    %v1965 = vsub.s32 %v1469, %v1964
    %v1966 = vrot.slane %v532, %v1965
    %v1967 = vsel %vm1474, %v1966, %v1962
    %v1968 = vlaneseq
    %v1969 = vshrl.u32 %v1968, 7
    %v1970 = vsub.s32 %v1476, %v1969
    %v1971 = vrot.slane %v534, %v1970
    %v1972 = vsel %vm1481, %v1971, %v1967
    %v1973 = vlaneseq
    %v1974 = vshrl.u32 %v1973, 7
    %v1975 = vsub.s32 %v1483, %v1974
    %v1976 = vrot.slane %v536, %v1975
    %v1977 = vsel %vm1488, %v1976, %v1972
    %v1978 = vlaneseq
    %v1979 = vshrl.u32 %v1978, 7
    %v1980 = vsub.s32 %v1490, %v1979
    %v1981 = vrot.slane %v538, %v1980
    %v1982 = vsel %vm1495, %v1981, %v1977
    %v1983 = vlaneseq
    %v1984 = vshrl.u32 %v1983, 7
    %v1985 = vsub.s32 %v1497, %v1984
    %v1986 = vrot.slane %v540, %v1985
    %v1987 = vsel %vm1502, %v1986, %v1982
    %v1988 = vlaneseq
    %v1989 = vshrl.u32 %v1988, 7
    %v1990 = vsub.s32 %v1504, %v1989
    %v1991 = vrot.slane %v542, %v1990
    %v1992 = vsel %vm1509, %v1991, %v1987
    %v1993 = vlaneseq
    %v1994 = vshrl.u32 %v1993, 7
    %v1995 = vsub.s32 %v1511, %v1994
    %v1996 = vrot.slane %v544, %v1995
    %v1997 = vsel %vm1516, %v1996, %v1992
    %v1998 = vlaneseq
    %v1999 = vshrl.u32 %v1998, 7
    %v2000 = vsub.s32 %v1518, %v1999
    %v2001 = vrot.slane %v546, %v2000
    %v2002 = vsel %vm1523, %v2001, %v1997
    %v2003 = vlaneseq
    %v2004 = vshrl.u32 %v2003, 7
    %v2005 = vsub.s32 %v1525, %v2004
    %v2006 = vrot.slane %v548, %v2005
    %v2007 = vsel %vm1530, %v2006, %v2002
    %v2008 = vlaneseq
    %v2009 = vshrl.u32 %v2008, 7
    %v2010 = vsub.s32 %v1532, %v2009
    %v2011 = vrot.slane %v550, %v2010
    %v2012 = vsel %vm1537, %v2011, %v2007
    %v2013 = vlaneseq
    %v2014 = vshrl.u32 %v2013, 7
    %v2015 = vsub.s32 %v905, %v2014
    %v2016 = vrot.slane %v552, %v2015
    %v2017 = vlaneseq
    %v2018 = vshrl.u32 %v2017, 7
    %v2019 = vsub.s32 %v1434, %v2018
    %v2020 = vrot.slane %v554, %v2019
    %v2021 = vsel %vm1439, %v2020, %v2016
    %v2022 = vlaneseq
    %v2023 = vshrl.u32 %v2022, 7
    %v2024 = vsub.s32 %v1441, %v2023
    %v2025 = vrot.slane %v556, %v2024
    %v2026 = vsel %vm1446, %v2025, %v2021
    %v2027 = vlaneseq
    %v2028 = vshrl.u32 %v2027, 7
    %v2029 = vsub.s32 %v1448, %v2028
    %v2030 = vrot.slane %v558, %v2029
    %v2031 = vsel %vm1453, %v2030, %v2026
    %v2032 = vlaneseq
    %v2033 = vshrl.u32 %v2032, 7
    %v2034 = vsub.s32 %v1455, %v2033
    %v2035 = vrot.slane %v560, %v2034
    %v2036 = vsel %vm1460, %v2035, %v2031
    %v2037 = vlaneseq
    %v2038 = vshrl.u32 %v2037, 7
    %v2039 = vsub.s32 %v1462, %v2038
    %v2040 = vrot.slane %v562, %v2039
    %v2041 = vsel %vm1467, %v2040, %v2036
    %v2042 = vlaneseq
    %v2043 = vshrl.u32 %v2042, 7
    %v2044 = vsub.s32 %v1469, %v2043
    %v2045 = vrot.slane %v564, %v2044
    %v2046 = vsel %vm1474, %v2045, %v2041
    %v2047 = vlaneseq
    %v2048 = vshrl.u32 %v2047, 7
    %v2049 = vsub.s32 %v1476, %v2048
    %v2050 = vrot.slane %v566, %v2049
    %v2051 = vsel %vm1481, %v2050, %v2046
    %v2052 = vlaneseq
    %v2053 = vshrl.u32 %v2052, 7
    %v2054 = vsub.s32 %v1483, %v2053
    %v2055 = vrot.slane %v568, %v2054
    %v2056 = vsel %vm1488, %v2055, %v2051
    %v2057 = vlaneseq
    %v2058 = vshrl.u32 %v2057, 7
    %v2059 = vsub.s32 %v1490, %v2058
    %v2060 = vrot.slane %v570, %v2059
    %v2061 = vsel %vm1495, %v2060, %v2056
    %v2062 = vlaneseq
    %v2063 = vshrl.u32 %v2062, 7
    %v2064 = vsub.s32 %v1497, %v2063
    %v2065 = vrot.slane %v572, %v2064
    %v2066 = vsel %vm1502, %v2065, %v2061
    %v2067 = vlaneseq
    %v2068 = vshrl.u32 %v2067, 7
    %v2069 = vsub.s32 %v1504, %v2068
    %v2070 = vrot.slane %v574, %v2069
    %v2071 = vsel %vm1509, %v2070, %v2066
    %v2072 = vlaneseq
    %v2073 = vshrl.u32 %v2072, 7
    %v2074 = vsub.s32 %v1511, %v2073
    %v2075 = vrot.slane %v576, %v2074
    %v2076 = vsel %vm1516, %v2075, %v2071
    %v2077 = vlaneseq
    %v2078 = vshrl.u32 %v2077, 7
    %v2079 = vsub.s32 %v1518, %v2078
    %v2080 = vrot.slane %v578, %v2079
    %v2081 = vsel %vm1523, %v2080, %v2076
    %v2082 = vlaneseq
    %v2083 = vshrl.u32 %v2082, 7
    %v2084 = vsub.s32 %v1525, %v2083
    %v2085 = vrot.slane %v580, %v2084
    %v2086 = vsel %vm1530, %v2085, %v2081
    %v2087 = vlaneseq
    %v2088 = vshrl.u32 %v2087, 7
    %v2089 = vsub.s32 %v1532, %v2088
    %v2090 = vrot.slane %v582, %v2089
    %v2091 = vsel %vm1537, %v2090, %v2086
    %v2092 = vlaneseq
    %v2093 = vshrl.u32 %v2092, 7
    %v2094 = vsub.s32 %v905, %v2093
    %v2095 = vrot.slane %v584, %v2094
    %v2096 = vlaneseq
    %v2097 = vshrl.u32 %v2096, 7
    %v2098 = vsub.s32 %v1434, %v2097
    %v2099 = vrot.slane %v586, %v2098
    %v2100 = vsel %vm1439, %v2099, %v2095
    %v2101 = vlaneseq
    %v2102 = vshrl.u32 %v2101, 7
    %v2103 = vsub.s32 %v1441, %v2102
    %v2104 = vrot.slane %v588, %v2103
    %v2105 = vsel %vm1446, %v2104, %v2100
    %v2106 = vlaneseq
    %v2107 = vshrl.u32 %v2106, 7
    %v2108 = vsub.s32 %v1448, %v2107
    %v2109 = vrot.slane %v590, %v2108
    %v2110 = vsel %vm1453, %v2109, %v2105
    %v2111 = vlaneseq
    %v2112 = vshrl.u32 %v2111, 7
    %v2113 = vsub.s32 %v1455, %v2112
    %v2114 = vrot.slane %v592, %v2113
    %v2115 = vsel %vm1460, %v2114, %v2110
    %v2116 = vlaneseq
    %v2117 = vshrl.u32 %v2116, 7
    %v2118 = vsub.s32 %v1462, %v2117
    %v2119 = vrot.slane %v594, %v2118
    %v2120 = vsel %vm1467, %v2119, %v2115
    %v2121 = vlaneseq
    %v2122 = vshrl.u32 %v2121, 7
    %v2123 = vsub.s32 %v1469, %v2122
    %v2124 = vrot.slane %v596, %v2123
    %v2125 = vsel %vm1474, %v2124, %v2120
    %v2126 = vlaneseq
    %v2127 = vshrl.u32 %v2126, 7
    %v2128 = vsub.s32 %v1476, %v2127
    %v2129 = vrot.slane %v598, %v2128
    %v2130 = vsel %vm1481, %v2129, %v2125
    %v2131 = vlaneseq
    %v2132 = vshrl.u32 %v2131, 7
    %v2133 = vsub.s32 %v1483, %v2132
    %v2134 = vrot.slane %v600, %v2133
    %v2135 = vsel %vm1488, %v2134, %v2130
    %v2136 = vlaneseq
    %v2137 = vshrl.u32 %v2136, 7
    %v2138 = vsub.s32 %v1490, %v2137
    %v2139 = vrot.slane %v602, %v2138
    %v2140 = vsel %vm1495, %v2139, %v2135
    %v2141 = vlaneseq
    %v2142 = vshrl.u32 %v2141, 7
    %v2143 = vsub.s32 %v1497, %v2142
    %v2144 = vrot.slane %v604, %v2143
    %v2145 = vsel %vm1502, %v2144, %v2140
    %v2146 = vlaneseq
    %v2147 = vshrl.u32 %v2146, 7
    %v2148 = vsub.s32 %v1504, %v2147
    %v2149 = vrot.slane %v606, %v2148
    %v2150 = vsel %vm1509, %v2149, %v2145
    %v2151 = vlaneseq
    %v2152 = vshrl.u32 %v2151, 7
    %v2153 = vsub.s32 %v1511, %v2152
    %v2154 = vrot.slane %v608, %v2153
    %v2155 = vsel %vm1516, %v2154, %v2150
    %v2156 = vlaneseq
    %v2157 = vshrl.u32 %v2156, 7
    %v2158 = vsub.s32 %v1518, %v2157
    %v2159 = vrot.slane %v610, %v2158
    %v2160 = vsel %vm1523, %v2159, %v2155
    %v2161 = vlaneseq
    %v2162 = vshrl.u32 %v2161, 7
    %v2163 = vsub.s32 %v1525, %v2162
    %v2164 = vrot.slane %v612, %v2163
    %v2165 = vsel %vm1530, %v2164, %v2160
    %v2166 = vlaneseq
    %v2167 = vshrl.u32 %v2166, 7
    %v2168 = vsub.s32 %v1532, %v2167
    %v2169 = vrot.slane %v614, %v2168
    %v2170 = vsel %vm1537, %v2169, %v2165
    %v2171 = vlaneseq
    %v2172 = vshrl.u32 %v2171, 7
    %v2173 = vsub.s32 %v905, %v2172
    %v2174 = vrot.slane %v616, %v2173
    %v2175 = vlaneseq
    %v2176 = vshrl.u32 %v2175, 7
    %v2177 = vsub.s32 %v1434, %v2176
    %v2178 = vrot.slane %v618, %v2177
    %v2179 = vsel %vm1439, %v2178, %v2174
    %v2180 = vlaneseq
    %v2181 = vshrl.u32 %v2180, 7
    %v2182 = vsub.s32 %v1441, %v2181
    %v2183 = vrot.slane %v620, %v2182
    %v2184 = vsel %vm1446, %v2183, %v2179
    %v2185 = vlaneseq
    %v2186 = vshrl.u32 %v2185, 7
    %v2187 = vsub.s32 %v1448, %v2186
    %v2188 = vrot.slane %v622, %v2187
    %v2189 = vsel %vm1453, %v2188, %v2184
    %v2190 = vlaneseq
    %v2191 = vshrl.u32 %v2190, 7
    %v2192 = vsub.s32 %v1455, %v2191
    %v2193 = vrot.slane %v624, %v2192
    %v2194 = vsel %vm1460, %v2193, %v2189
    %v2195 = vlaneseq
    %v2196 = vshrl.u32 %v2195, 7
    %v2197 = vsub.s32 %v1462, %v2196
    %v2198 = vrot.slane %v626, %v2197
    %v2199 = vsel %vm1467, %v2198, %v2194
    %v2200 = vlaneseq
    %v2201 = vshrl.u32 %v2200, 7
    %v2202 = vsub.s32 %v1469, %v2201
    %v2203 = vrot.slane %v628, %v2202
    %v2204 = vsel %vm1474, %v2203, %v2199
    %v2205 = vlaneseq
    %v2206 = vshrl.u32 %v2205, 7
    %v2207 = vsub.s32 %v1476, %v2206
    %v2208 = vrot.slane %v630, %v2207
    %v2209 = vsel %vm1481, %v2208, %v2204
    %v2210 = vlaneseq
    %v2211 = vshrl.u32 %v2210, 7
    %v2212 = vsub.s32 %v1483, %v2211
    %v2213 = vrot.slane %v632, %v2212
    %v2214 = vsel %vm1488, %v2213, %v2209
    %v2215 = vlaneseq
    %v2216 = vshrl.u32 %v2215, 7
    %v2217 = vsub.s32 %v1490, %v2216
    %v2218 = vrot.slane %v634, %v2217
    %v2219 = vsel %vm1495, %v2218, %v2214
    %v2220 = vlaneseq
    %v2221 = vshrl.u32 %v2220, 7
    %v2222 = vsub.s32 %v1497, %v2221
    %v2223 = vrot.slane %v636, %v2222
    %v2224 = vsel %vm1502, %v2223, %v2219
    %v2225 = vlaneseq
    %v2226 = vshrl.u32 %v2225, 7
    %v2227 = vsub.s32 %v1504, %v2226
    %v2228 = vrot.slane %v638, %v2227
    %v2229 = vsel %vm1509, %v2228, %v2224
    %v2230 = vlaneseq
    %v2231 = vshrl.u32 %v2230, 7
    %v2232 = vsub.s32 %v1511, %v2231
    %v2233 = vrot.slane %v640, %v2232
    %v2234 = vsel %vm1516, %v2233, %v2229
    %v2235 = vlaneseq
    %v2236 = vshrl.u32 %v2235, 7
    %v2237 = vsub.s32 %v1518, %v2236
    %v2238 = vrot.slane %v642, %v2237
    %v2239 = vsel %vm1523, %v2238, %v2234
    %v2240 = vlaneseq
    %v2241 = vshrl.u32 %v2240, 7
    %v2242 = vsub.s32 %v1525, %v2241
    %v2243 = vrot.slane %v644, %v2242
    %v2244 = vsel %vm1530, %v2243, %v2239
    %v2245 = vlaneseq
    %v2246 = vshrl.u32 %v2245, 7
    %v2247 = vsub.s32 %v1532, %v2246
    %v2248 = vrot.slane %v646, %v2247
    %v2249 = vsel %vm1537, %v2248, %v2244
    %v2250 = vlaneseq
    %v2251 = vshrl.u32 %v2250, 7
    %v2252 = vsub.s32 %v905, %v2251
    %v2253 = vrot.slane %v648, %v2252
    %v2254 = vlaneseq
    %v2255 = vshrl.u32 %v2254, 7
    %v2256 = vsub.s32 %v1434, %v2255
    %v2257 = vrot.slane %v650, %v2256
    %v2258 = vsel %vm1439, %v2257, %v2253
    %v2259 = vlaneseq
    %v2260 = vshrl.u32 %v2259, 7
    %v2261 = vsub.s32 %v1441, %v2260
    %v2262 = vrot.slane %v652, %v2261
    %v2263 = vsel %vm1446, %v2262, %v2258
    %v2264 = vlaneseq
    %v2265 = vshrl.u32 %v2264, 7
    %v2266 = vsub.s32 %v1448, %v2265
    %v2267 = vrot.slane %v654, %v2266
    %v2268 = vsel %vm1453, %v2267, %v2263
    %v2269 = vlaneseq
    %v2270 = vshrl.u32 %v2269, 7
    %v2271 = vsub.s32 %v1455, %v2270
    %v2272 = vrot.slane %v656, %v2271
    %v2273 = vsel %vm1460, %v2272, %v2268
    %v2274 = vlaneseq
    %v2275 = vshrl.u32 %v2274, 7
    %v2276 = vsub.s32 %v1462, %v2275
    %v2277 = vrot.slane %v658, %v2276
    %v2278 = vsel %vm1467, %v2277, %v2273
    %v2279 = vlaneseq
    %v2280 = vshrl.u32 %v2279, 7
    %v2281 = vsub.s32 %v1469, %v2280
    %v2282 = vrot.slane %v660, %v2281
    %v2283 = vsel %vm1474, %v2282, %v2278
    %v2284 = vlaneseq
    %v2285 = vshrl.u32 %v2284, 7
    %v2286 = vsub.s32 %v1476, %v2285
    %v2287 = vrot.slane %v662, %v2286
    %v2288 = vsel %vm1481, %v2287, %v2283
    %v2289 = vlaneseq
    %v2290 = vshrl.u32 %v2289, 7
    %v2291 = vsub.s32 %v1483, %v2290
    %v2292 = vrot.slane %v664, %v2291
    %v2293 = vsel %vm1488, %v2292, %v2288
    %v2294 = vlaneseq
    %v2295 = vshrl.u32 %v2294, 7
    %v2296 = vsub.s32 %v1490, %v2295
    %v2297 = vrot.slane %v666, %v2296
    %v2298 = vsel %vm1495, %v2297, %v2293
    %v2299 = vlaneseq
    %v2300 = vshrl.u32 %v2299, 7
    %v2301 = vsub.s32 %v1497, %v2300
    %v2302 = vrot.slane %v668, %v2301
    %v2303 = vsel %vm1502, %v2302, %v2298
    %v2304 = vlaneseq
    %v2305 = vshrl.u32 %v2304, 7
    %v2306 = vsub.s32 %v1504, %v2305
    %v2307 = vrot.slane %v670, %v2306
    %v2308 = vsel %vm1509, %v2307, %v2303
    %v2309 = vlaneseq
    %v2310 = vshrl.u32 %v2309, 7
    %v2311 = vsub.s32 %v1511, %v2310
    %v2312 = vrot.slane %v672, %v2311
    %v2313 = vsel %vm1516, %v2312, %v2308
    %v2314 = vlaneseq
    %v2315 = vshrl.u32 %v2314, 7
    %v2316 = vsub.s32 %v1518, %v2315
    %v2317 = vrot.slane %v674, %v2316
    %v2318 = vsel %vm1523, %v2317, %v2313
    %v2319 = vlaneseq
    %v2320 = vshrl.u32 %v2319, 7
    %v2321 = vsub.s32 %v1525, %v2320
    %v2322 = vrot.slane %v676, %v2321
    %v2323 = vsel %vm1530, %v2322, %v2318
    %v2324 = vlaneseq
    %v2325 = vshrl.u32 %v2324, 7
    %v2326 = vsub.s32 %v1532, %v2325
    %v2327 = vrot.slane %v678, %v2326
    %v2328 = vsel %vm1537, %v2327, %v2323
    %v2329 = vlaneseq
    %v2330 = vshrl.u32 %v2329, 7
    %v2331 = vsub.s32 %v905, %v2330
    %v2332 = vrot.slane %v680, %v2331
    %v2333 = vlaneseq
    %v2334 = vshrl.u32 %v2333, 7
    %v2335 = vsub.s32 %v1434, %v2334
    %v2336 = vrot.slane %v682, %v2335
    %v2337 = vsel %vm1439, %v2336, %v2332
    %v2338 = vlaneseq
    %v2339 = vshrl.u32 %v2338, 7
    %v2340 = vsub.s32 %v1441, %v2339
    %v2341 = vrot.slane %v684, %v2340
    %v2342 = vsel %vm1446, %v2341, %v2337
    %v2343 = vlaneseq
    %v2344 = vshrl.u32 %v2343, 7
    %v2345 = vsub.s32 %v1448, %v2344
    %v2346 = vrot.slane %v686, %v2345
    %v2347 = vsel %vm1453, %v2346, %v2342
    %v2348 = vlaneseq
    %v2349 = vshrl.u32 %v2348, 7
    %v2350 = vsub.s32 %v1455, %v2349
    %v2351 = vrot.slane %v688, %v2350
    %v2352 = vsel %vm1460, %v2351, %v2347
    %v2353 = vlaneseq
    %v2354 = vshrl.u32 %v2353, 7
    %v2355 = vsub.s32 %v1462, %v2354
    %v2356 = vrot.slane %v690, %v2355
    %v2357 = vsel %vm1467, %v2356, %v2352
    %v2358 = vlaneseq
    %v2359 = vshrl.u32 %v2358, 7
    %v2360 = vsub.s32 %v1469, %v2359
    %v2361 = vrot.slane %v692, %v2360
    %v2362 = vsel %vm1474, %v2361, %v2357
    %v2363 = vlaneseq
    %v2364 = vshrl.u32 %v2363, 7
    %v2365 = vsub.s32 %v1476, %v2364
    %v2366 = vrot.slane %v694, %v2365
    %v2367 = vsel %vm1481, %v2366, %v2362
    %v2368 = vlaneseq
    %v2369 = vshrl.u32 %v2368, 7
    %v2370 = vsub.s32 %v1483, %v2369
    %v2371 = vrot.slane %v696, %v2370
    %v2372 = vsel %vm1488, %v2371, %v2367
    %v2373 = vlaneseq
    %v2374 = vshrl.u32 %v2373, 7
    %v2375 = vsub.s32 %v1490, %v2374
    %v2376 = vrot.slane %v698, %v2375
    %v2377 = vsel %vm1495, %v2376, %v2372
    %v2378 = vlaneseq
    %v2379 = vshrl.u32 %v2378, 7
    %v2380 = vsub.s32 %v1497, %v2379
    %v2381 = vrot.slane %v700, %v2380
    %v2382 = vsel %vm1502, %v2381, %v2377
    %v2383 = vlaneseq
    %v2384 = vshrl.u32 %v2383, 7
    %v2385 = vsub.s32 %v1504, %v2384
    %v2386 = vrot.slane %v702, %v2385
    %v2387 = vsel %vm1509, %v2386, %v2382
    %v2388 = vlaneseq
    %v2389 = vshrl.u32 %v2388, 7
    %v2390 = vsub.s32 %v1511, %v2389
    %v2391 = vrot.slane %v704, %v2390
    %v2392 = vsel %vm1516, %v2391, %v2387
    %v2393 = vlaneseq
    %v2394 = vshrl.u32 %v2393, 7
    %v2395 = vsub.s32 %v1518, %v2394
    %v2396 = vrot.slane %v706, %v2395
    %v2397 = vsel %vm1523, %v2396, %v2392
    %v2398 = vlaneseq
    %v2399 = vshrl.u32 %v2398, 7
    %v2400 = vsub.s32 %v1525, %v2399
    %v2401 = vrot.slane %v708, %v2400
    %v2402 = vsel %vm1530, %v2401, %v2397
    %v2403 = vlaneseq
    %v2404 = vshrl.u32 %v2403, 7
    %v2405 = vsub.s32 %v1532, %v2404
    %v2406 = vrot.slane %v710, %v2405
    %v2407 = vsel %vm1537, %v2406, %v2402
    %v2408 = vlaneseq
    %v2409 = vshrl.u32 %v2408, 7
    %v2410 = vsub.s32 %v905, %v2409
    %v2411 = vrot.slane %v712, %v2410
    %v2412 = vlaneseq
    %v2413 = vshrl.u32 %v2412, 7
    %v2414 = vsub.s32 %v1434, %v2413
    %v2415 = vrot.slane %v714, %v2414
    %v2416 = vsel %vm1439, %v2415, %v2411
    %v2417 = vlaneseq
    %v2418 = vshrl.u32 %v2417, 7
    %v2419 = vsub.s32 %v1441, %v2418
    %v2420 = vrot.slane %v716, %v2419
    %v2421 = vsel %vm1446, %v2420, %v2416
    %v2422 = vlaneseq
    %v2423 = vshrl.u32 %v2422, 7
    %v2424 = vsub.s32 %v1448, %v2423
    %v2425 = vrot.slane %v718, %v2424
    %v2426 = vsel %vm1453, %v2425, %v2421
    %v2427 = vlaneseq
    %v2428 = vshrl.u32 %v2427, 7
    %v2429 = vsub.s32 %v1455, %v2428
    %v2430 = vrot.slane %v720, %v2429
    %v2431 = vsel %vm1460, %v2430, %v2426
    %v2432 = vlaneseq
    %v2433 = vshrl.u32 %v2432, 7
    %v2434 = vsub.s32 %v1462, %v2433
    %v2435 = vrot.slane %v722, %v2434
    %v2436 = vsel %vm1467, %v2435, %v2431
    %v2437 = vlaneseq
    %v2438 = vshrl.u32 %v2437, 7
    %v2439 = vsub.s32 %v1469, %v2438
    %v2440 = vrot.slane %v724, %v2439
    %v2441 = vsel %vm1474, %v2440, %v2436
    %v2442 = vlaneseq
    %v2443 = vshrl.u32 %v2442, 7
    %v2444 = vsub.s32 %v1476, %v2443
    %v2445 = vrot.slane %v726, %v2444
    %v2446 = vsel %vm1481, %v2445, %v2441
    %v2447 = vlaneseq
    %v2448 = vshrl.u32 %v2447, 7
    %v2449 = vsub.s32 %v1483, %v2448
    %v2450 = vrot.slane %v728, %v2449
    %v2451 = vsel %vm1488, %v2450, %v2446
    %v2452 = vlaneseq
    %v2453 = vshrl.u32 %v2452, 7
    %v2454 = vsub.s32 %v1490, %v2453
    %v2455 = vrot.slane %v730, %v2454
    %v2456 = vsel %vm1495, %v2455, %v2451
    %v2457 = vlaneseq
    %v2458 = vshrl.u32 %v2457, 7
    %v2459 = vsub.s32 %v1497, %v2458
    %v2460 = vrot.slane %v732, %v2459
    %v2461 = vsel %vm1502, %v2460, %v2456
    %v2462 = vlaneseq
    %v2463 = vshrl.u32 %v2462, 7
    %v2464 = vsub.s32 %v1504, %v2463
    %v2465 = vrot.slane %v734, %v2464
    %v2466 = vsel %vm1509, %v2465, %v2461
    %v2467 = vlaneseq
    %v2468 = vshrl.u32 %v2467, 7
    %v2469 = vsub.s32 %v1511, %v2468
    %v2470 = vrot.slane %v736, %v2469
    %v2471 = vsel %vm1516, %v2470, %v2466
    %v2472 = vlaneseq
    %v2473 = vshrl.u32 %v2472, 7
    %v2474 = vsub.s32 %v1518, %v2473
    %v2475 = vrot.slane %v738, %v2474
    %v2476 = vsel %vm1523, %v2475, %v2471
    %v2477 = vlaneseq
    %v2478 = vshrl.u32 %v2477, 7
    %v2479 = vsub.s32 %v1525, %v2478
    %v2480 = vrot.slane %v740, %v2479
    %v2481 = vsel %vm1530, %v2480, %v2476
    %v2482 = vlaneseq
    %v2483 = vshrl.u32 %v2482, 7
    %v2484 = vsub.s32 %v1532, %v2483
    %v2485 = vrot.slane %v742, %v2484
    %v2486 = vsel %vm1537, %v2485, %v2481
    %v2487 = vlaneseq
    %v2488 = vshrl.u32 %v2487, 7
    %v2489 = vsub.s32 %v905, %v2488
    %v2490 = vrot.slane %v744, %v2489
    %v2491 = vlaneseq
    %v2492 = vshrl.u32 %v2491, 7
    %v2493 = vsub.s32 %v1434, %v2492
    %v2494 = vrot.slane %v746, %v2493
    %v2495 = vsel %vm1439, %v2494, %v2490
    %v2496 = vlaneseq
    %v2497 = vshrl.u32 %v2496, 7
    %v2498 = vsub.s32 %v1441, %v2497
    %v2499 = vrot.slane %v748, %v2498
    %v2500 = vsel %vm1446, %v2499, %v2495
    %v2501 = vlaneseq
    %v2502 = vshrl.u32 %v2501, 7
    %v2503 = vsub.s32 %v1448, %v2502
    %v2504 = vrot.slane %v750, %v2503
    %v2505 = vsel %vm1453, %v2504, %v2500
    %v2506 = vlaneseq
    %v2507 = vshrl.u32 %v2506, 7
    %v2508 = vsub.s32 %v1455, %v2507
    %v2509 = vrot.slane %v752, %v2508
    %v2510 = vsel %vm1460, %v2509, %v2505
    %v2511 = vlaneseq
    %v2512 = vshrl.u32 %v2511, 7
    %v2513 = vsub.s32 %v1462, %v2512
    %v2514 = vrot.slane %v754, %v2513
    %v2515 = vsel %vm1467, %v2514, %v2510
    %v2516 = vlaneseq
    %v2517 = vshrl.u32 %v2516, 7
    %v2518 = vsub.s32 %v1469, %v2517
    %v2519 = vrot.slane %v756, %v2518
    %v2520 = vsel %vm1474, %v2519, %v2515
    %v2521 = vlaneseq
    %v2522 = vshrl.u32 %v2521, 7
    %v2523 = vsub.s32 %v1476, %v2522
    %v2524 = vrot.slane %v758, %v2523
    %v2525 = vsel %vm1481, %v2524, %v2520
    %v2526 = vlaneseq
    %v2527 = vshrl.u32 %v2526, 7
    %v2528 = vsub.s32 %v1483, %v2527
    %v2529 = vrot.slane %v760, %v2528
    %v2530 = vsel %vm1488, %v2529, %v2525
    %v2531 = vlaneseq
    %v2532 = vshrl.u32 %v2531, 7
    %v2533 = vsub.s32 %v1490, %v2532
    %v2534 = vrot.slane %v762, %v2533
    %v2535 = vsel %vm1495, %v2534, %v2530
    %v2536 = vlaneseq
    %v2537 = vshrl.u32 %v2536, 7
    %v2538 = vsub.s32 %v1497, %v2537
    %v2539 = vrot.slane %v764, %v2538
    %v2540 = vsel %vm1502, %v2539, %v2535
    %v2541 = vlaneseq
    %v2542 = vshrl.u32 %v2541, 7
    %v2543 = vsub.s32 %v1504, %v2542
    %v2544 = vrot.slane %v766, %v2543
    %v2545 = vsel %vm1509, %v2544, %v2540
    %v2546 = vlaneseq
    %v2547 = vshrl.u32 %v2546, 7
    %v2548 = vsub.s32 %v1511, %v2547
    %v2549 = vrot.slane %v768, %v2548
    %v2550 = vsel %vm1516, %v2549, %v2545
    %v2551 = vlaneseq
    %v2552 = vshrl.u32 %v2551, 7
    %v2553 = vsub.s32 %v1518, %v2552
    %v2554 = vrot.slane %v770, %v2553
    %v2555 = vsel %vm1523, %v2554, %v2550
    %v2556 = vlaneseq
    %v2557 = vshrl.u32 %v2556, 7
    %v2558 = vsub.s32 %v1525, %v2557
    %v2559 = vrot.slane %v772, %v2558
    %v2560 = vsel %vm1530, %v2559, %v2555
    %v2561 = vlaneseq
    %v2562 = vshrl.u32 %v2561, 7
    %v2563 = vsub.s32 %v1532, %v2562
    %v2564 = vrot.slane %v774, %v2563
    %v2565 = vsel %vm1537, %v2564, %v2560
    %v2566 = vlaneseq
    %v2567 = vshrl.u32 %v2566, 7
    %v2568 = vsub.s32 %v905, %v2567
    %v2569 = vrot.slane %v776, %v2568
    %v2570 = vlaneseq
    %v2571 = vshrl.u32 %v2570, 7
    %v2572 = vsub.s32 %v1434, %v2571
    %v2573 = vrot.slane %v778, %v2572
    %v2574 = vsel %vm1439, %v2573, %v2569
    %v2575 = vlaneseq
    %v2576 = vshrl.u32 %v2575, 7
    %v2577 = vsub.s32 %v1441, %v2576
    %v2578 = vrot.slane %v780, %v2577
    %v2579 = vsel %vm1446, %v2578, %v2574
    %v2580 = vlaneseq
    %v2581 = vshrl.u32 %v2580, 7
    %v2582 = vsub.s32 %v1448, %v2581
    %v2583 = vrot.slane %v782, %v2582
    %v2584 = vsel %vm1453, %v2583, %v2579
    %v2585 = vlaneseq
    %v2586 = vshrl.u32 %v2585, 7
    %v2587 = vsub.s32 %v1455, %v2586
    %v2588 = vrot.slane %v784, %v2587
    %v2589 = vsel %vm1460, %v2588, %v2584
    %v2590 = vlaneseq
    %v2591 = vshrl.u32 %v2590, 7
    %v2592 = vsub.s32 %v1462, %v2591
    %v2593 = vrot.slane %v786, %v2592
    %v2594 = vsel %vm1467, %v2593, %v2589
    %v2595 = vlaneseq
    %v2596 = vshrl.u32 %v2595, 7
    %v2597 = vsub.s32 %v1469, %v2596
    %v2598 = vrot.slane %v788, %v2597
    %v2599 = vsel %vm1474, %v2598, %v2594
    %v2600 = vlaneseq
    %v2601 = vshrl.u32 %v2600, 7
    %v2602 = vsub.s32 %v1476, %v2601
    %v2603 = vrot.slane %v790, %v2602
    %v2604 = vsel %vm1481, %v2603, %v2599
    %v2605 = vlaneseq
    %v2606 = vshrl.u32 %v2605, 7
    %v2607 = vsub.s32 %v1483, %v2606
    %v2608 = vrot.slane %v792, %v2607
    %v2609 = vsel %vm1488, %v2608, %v2604
    %v2610 = vlaneseq
    %v2611 = vshrl.u32 %v2610, 7
    %v2612 = vsub.s32 %v1490, %v2611
    %v2613 = vrot.slane %v794, %v2612
    %v2614 = vsel %vm1495, %v2613, %v2609
    %v2615 = vlaneseq
    %v2616 = vshrl.u32 %v2615, 7
    %v2617 = vsub.s32 %v1497, %v2616
    %v2618 = vrot.slane %v796, %v2617
    %v2619 = vsel %vm1502, %v2618, %v2614
    %v2620 = vlaneseq
    %v2621 = vshrl.u32 %v2620, 7
    %v2622 = vsub.s32 %v1504, %v2621
    %v2623 = vrot.slane %v798, %v2622
    %v2624 = vsel %vm1509, %v2623, %v2619
    %v2625 = vlaneseq
    %v2626 = vshrl.u32 %v2625, 7
    %v2627 = vsub.s32 %v1511, %v2626
    %v2628 = vrot.slane %v800, %v2627
    %v2629 = vsel %vm1516, %v2628, %v2624
    %v2630 = vlaneseq
    %v2631 = vshrl.u32 %v2630, 7
    %v2632 = vsub.s32 %v1518, %v2631
    %v2633 = vrot.slane %v802, %v2632
    %v2634 = vsel %vm1523, %v2633, %v2629
    %v2635 = vlaneseq
    %v2636 = vshrl.u32 %v2635, 7
    %v2637 = vsub.s32 %v1525, %v2636
    %v2638 = vrot.slane %v804, %v2637
    %v2639 = vsel %vm1530, %v2638, %v2634
    %v2640 = vlaneseq
    %v2641 = vshrl.u32 %v2640, 7
    %v2642 = vsub.s32 %v1532, %v2641
    %v2643 = vrot.slane %v806, %v2642
    %v2644 = vsel %vm1537, %v2643, %v2639
    %v2645 = vlaneseq
    %v2646 = vshrl.u32 %v2645, 7
    %v2647 = vsub.s32 %v905, %v2646
    %v2648 = vrot.slane %v808, %v2647
    %v2649 = vlaneseq
    %v2650 = vshrl.u32 %v2649, 7
    %v2651 = vsub.s32 %v1434, %v2650
    %v2652 = vrot.slane %v810, %v2651
    %v2653 = vsel %vm1439, %v2652, %v2648
    %v2654 = vlaneseq
    %v2655 = vshrl.u32 %v2654, 7
    %v2656 = vsub.s32 %v1441, %v2655
    %v2657 = vrot.slane %v812, %v2656
    %v2658 = vsel %vm1446, %v2657, %v2653
    %v2659 = vlaneseq
    %v2660 = vshrl.u32 %v2659, 7
    %v2661 = vsub.s32 %v1448, %v2660
    %v2662 = vrot.slane %v814, %v2661
    %v2663 = vsel %vm1453, %v2662, %v2658
    %v2664 = vlaneseq
    %v2665 = vshrl.u32 %v2664, 7
    %v2666 = vsub.s32 %v1455, %v2665
    %v2667 = vrot.slane %v816, %v2666
    %v2668 = vsel %vm1460, %v2667, %v2663
    %v2669 = vlaneseq
    %v2670 = vshrl.u32 %v2669, 7
    %v2671 = vsub.s32 %v1462, %v2670
    %v2672 = vrot.slane %v818, %v2671
    %v2673 = vsel %vm1467, %v2672, %v2668
    %v2674 = vlaneseq
    %v2675 = vshrl.u32 %v2674, 7
    %v2676 = vsub.s32 %v1469, %v2675
    %v2677 = vrot.slane %v820, %v2676
    %v2678 = vsel %vm1474, %v2677, %v2673
    %v2679 = vlaneseq
    %v2680 = vshrl.u32 %v2679, 7
    %v2681 = vsub.s32 %v1476, %v2680
    %v2682 = vrot.slane %v822, %v2681
    %v2683 = vsel %vm1481, %v2682, %v2678
    %v2684 = vlaneseq
    %v2685 = vshrl.u32 %v2684, 7
    %v2686 = vsub.s32 %v1483, %v2685
    %v2687 = vrot.slane %v824, %v2686
    %v2688 = vsel %vm1488, %v2687, %v2683
    %v2689 = vlaneseq
    %v2690 = vshrl.u32 %v2689, 7
    %v2691 = vsub.s32 %v1490, %v2690
    %v2692 = vrot.slane %v826, %v2691
    %v2693 = vsel %vm1495, %v2692, %v2688
    %v2694 = vlaneseq
    %v2695 = vshrl.u32 %v2694, 7
    %v2696 = vsub.s32 %v1497, %v2695
    %v2697 = vrot.slane %v828, %v2696
    %v2698 = vsel %vm1502, %v2697, %v2693
    %v2699 = vlaneseq
    %v2700 = vshrl.u32 %v2699, 7
    %v2701 = vsub.s32 %v1504, %v2700
    %v2702 = vrot.slane %v830, %v2701
    %v2703 = vsel %vm1509, %v2702, %v2698
    %v2704 = vlaneseq
    %v2705 = vshrl.u32 %v2704, 7
    %v2706 = vsub.s32 %v1511, %v2705
    %v2707 = vrot.slane %v832, %v2706
    %v2708 = vsel %vm1516, %v2707, %v2703
    %v2709 = vlaneseq
    %v2710 = vshrl.u32 %v2709, 7
    %v2711 = vsub.s32 %v1518, %v2710
    %v2712 = vrot.slane %v834, %v2711
    %v2713 = vsel %vm1523, %v2712, %v2708
    %v2714 = vlaneseq
    %v2715 = vshrl.u32 %v2714, 7
    %v2716 = vsub.s32 %v1525, %v2715
    %v2717 = vrot.slane %v836, %v2716
    %v2718 = vsel %vm1530, %v2717, %v2713
    %v2719 = vlaneseq
    %v2720 = vshrl.u32 %v2719, 7
    %v2721 = vsub.s32 %v1532, %v2720
    %v2722 = vrot.slane %v838, %v2721
    %v2723 = vsel %vm1537, %v2722, %v2718
    %v2724 = vsel %vm1073, %v1617, %v1538
    %v2725 = vsel %vm1075, %v1696, %v2724
    %v2726 = vsel %vm1077, %v1775, %v2725
    %v2727 = vsel %vm1079, %v1854, %v2726
    %v2728 = vsel %vm1081, %v1933, %v2727
    %v2729 = vsel %vm1083, %v2012, %v2728
    %v2730 = vsel %vm1085, %v2091, %v2729
    %v2731 = vsel %vm1073, %v2249, %v2170
    %v2732 = vsel %vm1075, %v2328, %v2731
    %v2733 = vsel %vm1077, %v2407, %v2732
    %v2734 = vsel %vm1079, %v2486, %v2733
    %v2735 = vsel %vm1081, %v2565, %v2734
    %v2736 = vsel %vm1083, %v2644, %v2735
    %v2737 = vsel %vm1085, %v2723, %v2736
    %2740 = vmatprep.subr.mxu0 0.0
    %2741 = vmatpush1.msra.mxu0 %v971
    %2742 = vmatprep.subr.mxu0 0.0
    %2743 = vmatpush1.msra.mxu0 %v972
    %2744 = vmatprep.subr.mxu0 0.0
    %2745 = vmatpush1.msra.mxu0 %v973
    %2746 = vmatprep.subr.mxu0 0.0
    %2747 = vmatpush1.msra.mxu0 %v974
    %2748 = vmatprep.subr.mxu0 0.0
    %2749 = vmatpush1.msra.mxu0 %v975
    %2750 = vmatprep.subr.mxu0 0.0
    %2751 = vmatpush1.msra.mxu0 %v976
    %2752 = vmatprep.subr.mxu0 0.0
    %2753 = vmatpush1.msra.mxu0 %v977
    %2754 = vmatprep.subr.mxu0 0.0
    %2755 = vmatpush1.msra.mxu0 %v978
    %2756 = vmatprep.subr.mxu0 0.0
    %2757 = vmatpush1.msra.mxu0 %v979
    %2758 = vmatprep.subr.mxu0 0.0
    %2759 = vmatpush1.msra.mxu0 %v980
    %2760 = vmatprep.subr.mxu0 0.0
    %2761 = vmatpush1.msra.mxu0 %v981
    %2762 = vmatprep.subr.mxu0 0.0
    %2763 = vmatpush1.msra.mxu0 %v982
    %2764 = vmatprep.subr.mxu0 0.0
    %2765 = vmatpush1.msra.mxu0 %v983
    %2766 = vmatprep.subr.mxu0 0.0
    %2767 = vmatpush1.msra.mxu0 %v984
    %2768 = vmatprep.subr.mxu0 0.0
    %2769 = vmatpush1.msra.mxu0 %v985
    %2770 = vmatprep.subr.mxu0 0.0
    %2771 = vmatpush1.msra.mxu0 %v986
    %2772 = vmatprep.subr.mxu0 0.0
    %2773 = vmatpush1.msra.mxu0 0.0
    %2774 = vmatprep.subr.mxu0 0.0
    %2775 = vmatpush1.msra.mxu0 0.0
    %2776 = vmatprep.subr.mxu0 0.0
    %2777 = vmatpush1.msra.mxu0 0.0
    %2778 = vmatprep.subr.mxu0 0.0
    %2779 = vmatpush1.msra.mxu0 0.0
    %2780 = vmatprep.subr.mxu0 0.0
    %2781 = vmatpush1.msra.mxu0 0.0
    %2782 = vmatprep.subr.mxu0 0.0
    %2783 = vmatpush1.msra.mxu0 0.0
    %2784 = vmatprep.subr.mxu0 0.0
    %2785 = vmatpush1.msra.mxu0 0.0
    %2786 = vmatprep.subr.mxu0 0.0
    %2787 = vmatpush1.msra.mxu0 0.0
    %2788 = vmatprep.subr.mxu0 0.0
    %2789 = vmatpush1.msra.mxu0 0.0
    %2790 = vmatprep.subr.mxu0 0.0
    %2791 = vmatpush1.msra.mxu0 0.0
    %2792 = vmatprep.subr.mxu0 0.0
    %2793 = vmatpush1.msra.mxu0 0.0
    %2794 = vmatprep.subr.mxu0 0.0
    %2795 = vmatpush1.msra.mxu0 0.0
    %2796 = vmatprep.subr.mxu0 0.0
    %2797 = vmatpush1.msra.mxu0 0.0
    %2798 = vmatprep.subr.mxu0 0.0
    %2799 = vmatpush1.msra.mxu0 0.0
    %2800 = vmatprep.subr.mxu0 0.0
    %2801 = vmatpush1.msra.mxu0 0.0
    %2802 = vmatprep.subr.mxu0 0.0
    %2803 = vmatpush1.msra.mxu0 0.0
    %2804 = vmatprep.mubr.f32.mxu0 0.0
    %2805 = vmatmul.mubr.f32.gmra.mrb[0].mxu0 %v2730
    %v2806 = vpop.f32.mrb[0].mxu0
    %v2807 = vadd.f32 %v1166, %v2806
    %v2808 = vpop.f32.mrb[0].mxu0
    %2809 = vmatprep.mubr.f32.mxu0 0.0
    %2810 = vmatmul.mubr.f32.gmra.mrb[0].mxu0 %v2737
    %v2811 = vpop.f32.mrb[0].mxu0
    %v2812 = vadd.f32 %v1171, %v2811
    %v2813 = vpop.f32.mrb[0].mxu0
    %2814 = vdwg.mxu0
    %vm2815 = vcmp.gt.f32.partialorder %v2807, 256.0
    %vm2816 = vcmp.gt.f32.partialorder %v2812, 256.0
    %v2817 = vsel %vm2815, 1, 0
    %v2818 = vsel %vm2816, 1, 0
    %v2819 = vcvt.s32.f32 %v2817
    %v2820 = vcvt.s32.f32 %v2818
    %2821 = vst [vmem:[#allocation7] sm:$0xff] %v2819
    %2822 = vst [vmem:[#allocation7 + $0x8] sm:$0xff] %v2820
    // Predicated region
    $region18: #{tpu_custom_call.1} parent=1 // pred_check
      _
    $region19: #{tpu_custom_call.1} parent=1 // pred_check_branch
      %2824 = sbr.rel (0) target = $region21
    $region20: #{tpu_custom_call.1} parent=1 // pred_region
      %s2826 = ssub.s32 256, 256
      %2827 = vsyncadd [#allocation4], %s2826
      %s2828 = sshll.u32 [#allocation7], 4
      %s2829 = int_to_ptr.vmem [resolvable:$true] %s2828
      %2834 = dma.vmem_to_hbm [thread:$0]  %s2829, 256, %s2, [#allocation4], 128, 128, 8
    $region21: #{tpu_custom_call.1} parent=1 // pred_fallthru
      _
    // Predicated region
    $region22: #{tpu_custom_call.1} parent=1 // pred_check
      _
    $region23: #{tpu_custom_call.1} parent=1 // pred_check_branch
      %2836 = sbr.rel (0) target = $region25
    $region24: #{tpu_custom_call.1} parent=1 // pred_region
      %2837 = dma.done [#allocation4], 256
    $region25: #{tpu_custom_call.1} parent=1 // pred_fallthru
      _
    %2838 = vsyncpa [#allocation3], 1
    %2839 = vsyncpa [#allocation6], 1
    %2840 = vsyncpa [#allocation4], 1

</llo_original>
